<compile_context>
chip_gen: v6e
topology: v6e:2x2x1
jax: 0.10.0
libtpu: 0.0.40
codegen_flags: <defaults>
</compile_context>

<pallas_src>
import functools

import numpy as np
import jax
import jax.numpy as jnp
from jax.experimental import pallas as pl
from jax.experimental.pallas import tpu as pltpu


# ----------------------------------------------------------------------------
# helpers
# ----------------------------------------------------------------------------
def _layer_norm(x, gamma, beta, eps):
    """Torch-style LayerNorm over the last axis (biased variance)."""
    mean = jnp.mean(x, axis=-1, keepdims=True)
    xc = x - mean
    var = jnp.mean(xc * xc, axis=-1, keepdims=True)
    return xc * jax.lax.rsqrt(var + eps) * gamma + beta


def sinusoidal_position_embeddings(n_pos, dim):
    pos = np.arange(n_pos, dtype=np.float64)[:, None]
    j = np.arange(dim, dtype=np.float64)[None, :]
    theta = pos / np.power(10000.0, 2.0 * (j // 2) / dim)
    e = np.zeros((n_pos, dim), dtype=np.float32)
    e[:, 0::2] = np.sin(theta[:, 0::2])
    e[:, 1::2] = np.cos(theta[:, 1::2])
    return jnp.asarray(e)


def embeddings_forward(input_ids, word_emb, pos_emb, gamma, beta):
    # TODO(synk): vocab gather stays in XLA; a Pallas gather needs manual DMA
    # and is not worthwhile at these shapes.
    seq_len = input_ids.shape[1]
    w = jnp.take(word_emb, input_ids, axis=0)            # (B, S, D)
    e = w + pos_emb[:seq_len][None, :, :]
    return _layer_norm(e, gamma, beta, 1e-12)


# ----------------------------------------------------------------------------
# fused encoder-layer kernel
# ----------------------------------------------------------------------------
def _encoder_layer_kernel(x_ref, wqkv_ref, wh_ref, bh_ref,
                          g1_ref, b1_ref,
                          wf1_ref, bf1_ref, wf2_ref, bf2_ref,
                          g2_ref, b2_ref,
                          out_ref,
                          ctx_ref,
                          *, num_heads, d_k, block_b, seq_len, d_model, ln_eps):
    D = d_model
    rows = block_b * seq_len

    x = x_ref[...]                                       # (Bt, S, D)
    xf = x.reshape(rows, D)                              # fold batch into M

    # --- fused QKV projection: one big MXU matmul (review #1, #4) ---
    qkv = jnp.dot(xf, wqkv_ref[...], preferred_element_type=jnp.float32)
    qkv = qkv.reshape(block_b, seq_len, 3 * D)
    scale = 1.0 / (float(d_k) ** 0.5)
    q = qkv[:, :, 0:D] * scale                           # scale once (review #5)
    k = qkv[:, :, D:2 * D]
    v = qkv[:, :, 2 * D:3 * D]

    # --- per-head attention, batched over the folded batch dim (review #2).
    # A is kept purely on-chip and never written to HBM (review #6/#7).
    for h in range(num_heads):
        lo = h * d_k
        q_h = q[:, :, lo:lo + d_k]                       # (Bt, S, d_k)
        k_h = k[:, :, lo:lo + d_k]
        v_h = v[:, :, lo:lo + d_k]

        s_h = jnp.einsum('bqd,bkd->bqk', q_h, k_h,
                         preferred_element_type=jnp.float32)   # (Bt, S, S)
        m = jnp.max(s_h, axis=-1, keepdims=True)
        e = jnp.exp(s_h - m)
        denom = jnp.sum(e, axis=-1, keepdims=True)
        a_h = e * pl.reciprocal(denom, approx=True)             # EUP (review #5)

        c_h = jnp.einsum('bqk,bkd->bqd', a_h, v_h,
                         preferred_element_type=jnp.float32)    # (Bt, S, d_k)
        # Write each head directly into its lane slice of the VMEM scratch --
        # no lane-axis concatenate (review #3).
        ctx_ref[:, lo:lo + d_k] = c_h.reshape(rows, d_k)

    # --- output projection W_h (+ bias) ---
    attn = jnp.dot(ctx_ref[...], wh_ref[...],
                   preferred_element_type=jnp.float32) + bh_ref[...]

    # --- residual + LayerNorm1 ---
    h1 = _layer_norm(xf + attn, g1_ref[...], b1_ref[...], ln_eps)

    # --- position-wise FFN (dropout is identity in eval mode) ---
    f1 = jnp.dot(h1, wf1_ref[...], preferred_element_type=jnp.float32) + bf1_ref[...]
    f1 = jnp.maximum(f1, 0.0)
    f2 = jnp.dot(f1, wf2_ref[...], preferred_element_type=jnp.float32) + bf2_ref[...]

    # --- residual + LayerNorm2 ---
    h2 = _layer_norm(h1 + f2, g2_ref[...], b2_ref[...], ln_eps)
    out_ref[...] = h2.reshape(block_b, seq_len, D).astype(out_ref.dtype)


def encoder_layer_forward(x, lp, *, num_heads, block_b=None):
    """One fused encoder layer.  lp holds pre-transposed (d_in, d_out) weights."""
    B, S, D = x.shape
    F = lp['wf1'].shape[1]
    assert D % num_heads == 0
    d_k = D // num_heads

    if block_b is None:
        # Fold enough batch elements so each grid step feeds the MXU ~256 rows
        # (review #1).  On v7x (2 TCs) prefer >=2 grid steps when B allows.
        block_b = max(1, min(B, max(1, 256 // S)))
        while B % block_b:
            block_b -= 1
    grid = (B // block_b,)

    # Self-attention in the encoder => fuse Q/K/V weights host-side (review #4).
    w_qkv = jnp.concatenate([lp['wq'], lp['wk'], lp['wv']], axis=1)   # (D, 3D)

    kernel = functools.partial(
        _encoder_layer_kernel, num_heads=num_heads, d_k=d_k,
        block_b=block_b, seq_len=S, d_model=D, ln_eps=1e-6)

    # NOTE(review #11): at realistic D these constant-index weight blocks could
    # use pipeline_mode=pl.Buffered(1) (or a one-time VMEM copy) to avoid
    # double-buffering; irrelevant at these toy sizes.
    def const(shape):
        return pl.BlockSpec(shape, lambda b: (0,) * len(shape))

    return pl.pallas_call(
        kernel,
        out_shape=jax.ShapeDtypeStruct((B, S, D), jnp.float32),
        grid_spec=pltpu.PrefetchScalarGridSpec(
            num_scalar_prefetch=0,
            grid=grid,
            in_specs=[
                pl.BlockSpec((block_b, S, D), lambda b: (b, 0, 0)),  # x
                const((D, 3 * D)),                                   # w_qkv
                const((D, D)),                                       # w_h
                const((1, D)),                                       # b_h
                const((1, D)),                                       # ln1 gamma
                const((1, D)),                                       # ln1 beta
                const((D, F)),                                       # w_ff1
                const((1, F)),                                       # b_ff1
                const((F, D)),                                       # w_ff2
                const((1, D)),                                       # b_ff2
                const((1, D)),                                       # ln2 gamma
                const((1, D)),                                       # ln2 beta
            ],
            out_specs=pl.BlockSpec((block_b, S, D), lambda b: (b, 0, 0)),
            scratch_shapes=[pltpu.VMEM((block_b * S, D), jnp.float32)],
        ),
        compiler_params=pltpu.CompilerParams(
            dimension_semantics=("parallel",)),
    )(x, w_qkv, lp['wh'], lp['bh'].reshape(1, D),
      lp['g1'].reshape(1, D), lp['b1'].reshape(1, D),
      lp['wf1'], lp['bf1'].reshape(1, F),
      lp['wf2'], lp['bf2'].reshape(1, D),
      lp['g2'].reshape(1, D), lp['b2'].reshape(1, D))


# ----------------------------------------------------------------------------
# classification head kernel: max over sequence + dense
# ----------------------------------------------------------------------------
def _classifier_kernel(x_ref, w_ref, b_ref, out_ref, *, seq_len):
    x = x_ref[...]                                       # (B, S, D)
    pooled = x[:, 0, :]
    for s in range(1, seq_len):                          # unrolled sublane max
        pooled = jnp.maximum(pooled, x[:, s, :])
    out_ref[...] = (jnp.dot(pooled, w_ref[...],
                            preferred_element_type=jnp.float32)
                    + b_ref[...]).astype(out_ref.dtype)


def classifier_head(x, w_dense, b_dense):
    B, S, D = x.shape
    A = w_dense.shape[1]
    kernel = functools.partial(_classifier_kernel, seq_len=S)
    return pl.pallas_call(
        kernel,
        out_shape=jax.ShapeDtypeStruct((B, A), jnp.float32),
        grid_spec=pltpu.PrefetchScalarGridSpec(
            num_scalar_prefetch=0,
            grid=(1,),
            in_specs=[
                pl.BlockSpec((B, S, D), lambda i: (0, 0, 0)),
                pl.BlockSpec((D, A), lambda i: (0, 0)),
                pl.BlockSpec((1, A), lambda i: (0, 0)),
            ],
            out_specs=pl.BlockSpec((B, A), lambda i: (0, 0)),
        ),
        compiler_params=pltpu.CompilerParams(
            dimension_semantics=("arbitrary",)),
    )(x, w_dense, b_dense.reshape(1, A))


# ----------------------------------------------------------------------------
# full model forward
# ----------------------------------------------------------------------------
def transformer_classifier_forward(input_ids, params, *, num_heads, block_b=None):
    x = embeddings_forward(input_ids, params['word_emb'], params['pos_emb'],
                           params['g_emb'], params['b_emb'])
    for lp in params['layers']:
        x = encoder_layer_forward(x, lp, num_heads=num_heads, block_b=block_b)
    return classifier_head(x, params['w_dense'], params['b_dense'])


# ----------------------------------------------------------------------------
# pure-JAX reference mirroring the PyTorch module (eval mode)
# ----------------------------------------------------------------------------
def _reference_forward(input_ids, params, *, num_heads):
    x = embeddings_forward(input_ids, params['word_emb'], params['pos_emb'],
                           params['g_emb'], params['b_emb'])
    D = x.shape[-1]
    d_k = D // num_heads
    for lp in params['layers']:
        B, S, _ = x.shape

        def split(y):
            return y.reshape(B, S, num_heads, d_k).transpose(0, 2, 1, 3)

        q = split(x @ lp['wq']) / np.sqrt(d_k)
        k = split(x @ lp['wk'])
        v = split(x @ lp['wv'])
        scores = jnp.einsum('bhqd,bhkd->bhqk', q, k)
        a = jax.nn.softmax(scores, axis=-1)
        h = jnp.einsum('bhqk,bhkd->bhqd', a, v)
        h = h.transpose(0, 2, 1, 3).reshape(B, S, D)
        attn = h @ lp['wh'] + lp['bh']
        out1 = _layer_norm(x + attn, lp['g1'], lp['b1'], 1e-6)
        ffn = jnp.maximum(out1 @ lp['wf1'] + lp['bf1'], 0.0) @ lp['wf2'] + lp['bf2']
        x = _layer_norm(out1 + ffn, lp['g2'], lp['b2'], 1e-6)
    pooled = jnp.max(x, axis=1)
    return pooled @ params['w_dense'] + params['b_dense']


# ----------------------------------------------------------------------------
# deterministic parameter init (nn.Linear weights stored pre-transposed as
# (d_in, d_out) so the kernels compute y = x @ W + b)
# ----------------------------------------------------------------------------
def init_params(key, *, num_layers, d_model, ff_dim, vocab_size, max_pos,
                num_answers):
    k_emb, k_ln, k_dense, *k_layers = jax.random.split(key, 3 + num_layers)

    def linear(k, d_in, d_out):
        s = 1.0 / np.sqrt(d_in)
        kw, kb = jax.random.split(k)
        return (jax.random.uniform(kw, (d_in, d_out), jnp.float32, -s, s),
                jax.random.uniform(kb, (d_out,), jnp.float32, -s, s))

    def ln(k, dim):
        kg, kb = jax.random.split(k)
        return (1.0 + 0.1 * jax.random.normal(kg, (dim,), jnp.float32),
                0.1 * jax.random.normal(kb, (dim,), jnp.float32))

    word_emb = jax.random.normal(k_emb, (vocab_size, d_model), jnp.float32)
    word_emb = word_emb.at[1].set(0.0)                    # padding_idx = 1
    g_emb, b_emb = ln(k_ln, d_model)

    layers = []
    for kl in k_layers:
        ks = jax.random.split(kl, 8)
        wq, _ = linear(ks[0], d_model, d_model)           # W_q/W_k/W_v: bias=False
        wk, _ = linear(ks[1], d_model, d_model)
        wv, _ = linear(ks[2], d_model, d_model)
        wh, bh = linear(ks[3], d_model, d_model)
        wf1, bf1 = linear(ks[4], d_model, ff_dim)
        wf2, bf2 = linear(ks[5], ff_dim, d_model)
        g1, b1 = ln(ks[6], d_model)
        g2, b2 = ln(ks[7], d_model)
        layers.append(dict(wq=wq, wk=wk, wv=wv, wh=wh, bh=bh,
                           wf1=wf1, bf1=bf1, wf2=wf2, bf2=bf2,
                           g1=g1, b1=b1, g2=g2, b2=b2))

    w_dense, b_dense = linear(k_dense, d_model, num_answers)
    return dict(word_emb=word_emb,
                pos_emb=sinusoidal_position_embeddings(max_pos, d_model),
                g_emb=g_emb, b_emb=b_emb, layers=layers,
                w_dense=w_dense, b_dense=b_dense)


if __name__ == "__main__":
    B, S = 2, 8
    d_model, num_heads, num_layers, ff_dim = 32, 4, 2, 64
    vocab_size, num_answers, max_pos = 50, 2, 10000

    root = jax.random.PRNGKey(0)
    k_params, k_ids = jax.random.split(root)
    params = init_params(k_params, num_layers=num_layers, d_model=d_model,
                         ff_dim=ff_dim, vocab_size=vocab_size,
                         max_pos=max_pos, num_answers=num_answers)
    input_ids = jax.random.randint(k_ids, (B, S), 0, vocab_size)

    fwd = jax.jit(functools.partial(transformer_classifier_forward,
                                    num_heads=num_heads))
    logits = fwd(input_ids, params)
    jax.block_until_ready(logits)

    ref = _reference_forward(input_ids, params, num_heads=num_heads)
    assert logits.shape == (B, num_answers)
    # The approx EUP reciprocal in the softmax (per the perf review) is the
    # only intended numerics deviation from the pure-f32 reference.
    assert jnp.allclose(logits, ref, atol=5e-3, rtol=5e-3), (
        float(jnp.max(jnp.abs(logits - ref))))

    print("KERNEL_OK")
</pallas_src>

<mosaic_0001>
module attributes {stable_mosaic.version = 11 : i64} {
  func.func @_classifier_kernel(%arg0: i32, %arg1: memref<2x8x32xf32, #tpu.memory_space<vmem>>, %arg2: memref<32x2xf32, #tpu.memory_space<vmem>>, %arg3: memref<1x2xf32, #tpu.memory_space<vmem>>, %arg4: memref<2x2xf32, #tpu.memory_space<vmem>>) attributes {dimension_semantics = [#tpu.dimension_semantics<arbitrary>], iteration_bounds = array<i64: 1>, scalar_prefetch = 0 : i64, scratch_operands = 0 : i64, tpu.core_type = #tpu.core_type<tc>, window_params = [{pipeline_mode = #tpu.pipeline_mode<synchronous>, transform_indices = @transform_0, window_bounds = array<i64: 2, 8, 32>}, {pipeline_mode = #tpu.pipeline_mode<synchronous>, transform_indices = @transform_1, window_bounds = array<i64: 32, 2>}, {pipeline_mode = #tpu.pipeline_mode<synchronous>, transform_indices = @transform_2, window_bounds = array<i64: 1, 2>}, {pipeline_mode = #tpu.pipeline_mode<synchronous>, transform_indices = @transform_3, window_bounds = array<i64: 2, 2>}]} {
    %c0 = arith.constant 0 : index
    %c0_0 = arith.constant 0 : index
    %c0_1 = arith.constant 0 : index
    %0 = vector.load %arg1[%c0, %c0_0, %c0_1] : memref<2x8x32xf32, #tpu.memory_space<vmem>>, vector<2x8x32xf32>
    %1 = vector.extract_strided_slice %0 {offsets = [0, 0, 0], sizes = [2, 1, 32], strides = [1, 1, 1]} : vector<2x8x32xf32> to vector<2x1x32xf32>
    %2 = vector.shape_cast %1 : vector<2x1x32xf32> to vector<2x32xf32>
    %3 = vector.extract_strided_slice %0 {offsets = [0, 1, 0], sizes = [2, 1, 32], strides = [1, 1, 1]} : vector<2x8x32xf32> to vector<2x1x32xf32>
    %4 = vector.shape_cast %3 : vector<2x1x32xf32> to vector<2x32xf32>
    %5 = arith.maximumf %2, %4 : vector<2x32xf32>
    %6 = vector.extract_strided_slice %0 {offsets = [0, 2, 0], sizes = [2, 1, 32], strides = [1, 1, 1]} : vector<2x8x32xf32> to vector<2x1x32xf32>
    %7 = vector.shape_cast %6 : vector<2x1x32xf32> to vector<2x32xf32>
    %8 = arith.maximumf %5, %7 : vector<2x32xf32>
    %9 = vector.extract_strided_slice %0 {offsets = [0, 3, 0], sizes = [2, 1, 32], strides = [1, 1, 1]} : vector<2x8x32xf32> to vector<2x1x32xf32>
    %10 = vector.shape_cast %9 : vector<2x1x32xf32> to vector<2x32xf32>
    %11 = arith.maximumf %8, %10 : vector<2x32xf32>
    %12 = vector.extract_strided_slice %0 {offsets = [0, 4, 0], sizes = [2, 1, 32], strides = [1, 1, 1]} : vector<2x8x32xf32> to vector<2x1x32xf32>
    %13 = vector.shape_cast %12 : vector<2x1x32xf32> to vector<2x32xf32>
    %14 = arith.maximumf %11, %13 : vector<2x32xf32>
    %15 = vector.extract_strided_slice %0 {offsets = [0, 5, 0], sizes = [2, 1, 32], strides = [1, 1, 1]} : vector<2x8x32xf32> to vector<2x1x32xf32>
    %16 = vector.shape_cast %15 : vector<2x1x32xf32> to vector<2x32xf32>
    %17 = arith.maximumf %14, %16 : vector<2x32xf32>
    %18 = vector.extract_strided_slice %0 {offsets = [0, 6, 0], sizes = [2, 1, 32], strides = [1, 1, 1]} : vector<2x8x32xf32> to vector<2x1x32xf32>
    %19 = vector.shape_cast %18 : vector<2x1x32xf32> to vector<2x32xf32>
    %20 = arith.maximumf %17, %19 : vector<2x32xf32>
    %21 = vector.extract_strided_slice %0 {offsets = [0, 7, 0], sizes = [2, 1, 32], strides = [1, 1, 1]} : vector<2x8x32xf32> to vector<2x1x32xf32>
    %22 = vector.shape_cast %21 : vector<2x1x32xf32> to vector<2x32xf32>
    %23 = arith.maximumf %20, %22 : vector<2x32xf32>
    %c0_2 = arith.constant 0 : index
    %c0_3 = arith.constant 0 : index
    %24 = vector.load %arg2[%c0_2, %c0_3] : memref<32x2xf32, #tpu.memory_space<vmem>>, vector<32x2xf32>
    %cst = arith.constant dense<0.000000e+00> : vector<2x2xf32>
    %25 = tpu.matmul %23, %24, %cst {dimension_numbers = #tpu.dot_dimension_numbers<[1], [0], [0], [1], [0, 0, 1, 1], [], []>} : vector<2x32xf32>, vector<32x2xf32>, vector<2x2xf32> -> vector<2x2xf32>
    %c0_4 = arith.constant 0 : index
    %c0_5 = arith.constant 0 : index
    %26 = vector.load %arg3[%c0_4, %c0_5] : memref<1x2xf32, #tpu.memory_space<vmem>>, vector<1x2xf32>
    %27 = vector.broadcast %26 : vector<1x2xf32> to vector<2x2xf32>
    %28 = arith.addf %25, %27 : vector<2x2xf32>
    %c0_6 = arith.constant 0 : index
    %c0_7 = arith.constant 0 : index
    %29 = vector.load %arg4[%c0_6, %c0_7] : memref<2x2xf32, #tpu.memory_space<vmem>>, vector<2x2xf32>
    tpu.vector_store %arg4[%c0_6, %c0_7], %28 {strides = array<i32>} : memref<2x2xf32, #tpu.memory_space<vmem>>, vector<2x2xf32>,
    return
  }
  func.func @transform_0(%arg0: i32) -> (i32, i32, i32) {
    %c0_i32 = arith.constant 0 : i32
    %c0_i32_0 = arith.constant 0 : i32
    %c0_i32_1 = arith.constant 0 : i32
    %c0_i32_2 = arith.constant 0 : i32
    return %c0_i32, %c0_i32_0, %c0_i32_1 : i32, i32, i32
  }
  func.func @transform_1(%arg0: i32) -> (i32, i32) {
    %c0_i32 = arith.constant 0 : i32
    %c0_i32_0 = arith.constant 0 : i32
    %c0_i32_1 = arith.constant 0 : i32
    return %c0_i32, %c0_i32_0 : i32, i32
  }
  func.func @transform_2(%arg0: i32) -> (i32, i32) {
    %c0_i32 = arith.constant 0 : i32
    %c0_i32_0 = arith.constant 0 : i32
    %c0_i32_1 = arith.constant 0 : i32
    return %c0_i32, %c0_i32_0 : i32, i32
  }
  func.func @transform_3(%arg0: i32) -> (i32, i32) {
    %c0_i32 = arith.constant 0 : i32
    %c0_i32_0 = arith.constant 0 : i32
    %c0_i32_1 = arith.constant 0 : i32
    return %c0_i32, %c0_i32_0 : i32, i32
  }
}

module attributes {stable_mosaic.version = 11 : i64} {
  func.func @_encoder_layer_kernel(%arg0: i32, %arg1: memref<2x8x32xf32, #tpu.memory_space<vmem>>, %arg2: memref<32x96xf32, #tpu.memory_space<vmem>>, %arg3: memref<32x32xf32, #tpu.memory_space<vmem>>, %arg4: memref<1x32xf32, #tpu.memory_space<vmem>>, %arg5: memref<1x32xf32, #tpu.memory_space<vmem>>, %arg6: memref<1x32xf32, #tpu.memory_space<vmem>>, %arg7: memref<32x64xf32, #tpu.memory_space<vmem>>, %arg8: memref<1x64xf32, #tpu.memory_space<vmem>>, %arg9: memref<64x32xf32, #tpu.memory_space<vmem>>, %arg10: memref<1x32xf32, #tpu.memory_space<vmem>>, %arg11: memref<1x32xf32, #tpu.memory_space<vmem>>, %arg12: memref<1x32xf32, #tpu.memory_space<vmem>>, %arg13: memref<2x8x32xf32, #tpu.memory_space<vmem>>, %arg14: memref<16x32xf32, #tpu.memory_space<vmem>>) attributes {dimension_semantics = [#tpu.dimension_semantics<parallel>], iteration_bounds = array<i64: 1>, scalar_prefetch = 0 : i64, scratch_operands = 1 : i64, tpu.core_type = #tpu.core_type<tc>, window_params = [{transform_indices = @transform_0, window_bounds = array<i64: 2, 8, 32>}, {pipeline_mode = #tpu.pipeline_mode<synchronous>, transform_indices = @transform_1, window_bounds = array<i64: 32, 96>}, {pipeline_mode = #tpu.pipeline_mode<synchronous>, transform_indices = @transform_2, window_bounds = array<i64: 32, 32>}, {pipeline_mode = #tpu.pipeline_mode<synchronous>, transform_indices = @transform_3, window_bounds = array<i64: 1, 32>}, {pipeline_mode = #tpu.pipeline_mode<synchronous>, transform_indices = @transform_4, window_bounds = array<i64: 1, 32>}, {pipeline_mode = #tpu.pipeline_mode<synchronous>, transform_indices = @transform_5, window_bounds = array<i64: 1, 32>}, {pipeline_mode = #tpu.pipeline_mode<synchronous>, transform_indices = @transform_6, window_bounds = array<i64: 32, 64>}, {pipeline_mode = #tpu.pipeline_mode<synchronous>, transform_indices = @transform_7, window_bounds = array<i64: 1, 64>}, {pipeline_mode = #tpu.pipeline_mode<synchronous>, transform_indices = @transform_8, window_bounds = array<i64: 64, 32>}, {pipeline_mode = #tpu.pipeline_mode<synchronous>, transform_indices = @transform_9, window_bounds = array<i64: 1, 32>}, {pipeline_mode = #tpu.pipeline_mode<synchronous>, transform_indices = @transform_10, window_bounds = array<i64: 1, 32>}, {pipeline_mode = #tpu.pipeline_mode<synchronous>, transform_indices = @transform_11, window_bounds = array<i64: 1, 32>}, {transform_indices = @transform_12, window_bounds = array<i64: 2, 8, 32>}]} {
    %c0 = arith.constant 0 : index
    %c0_0 = arith.constant 0 : index
    %c0_1 = arith.constant 0 : index
    %0 = vector.load %arg1[%c0, %c0_0, %c0_1] : memref<2x8x32xf32, #tpu.memory_space<vmem>>, vector<2x8x32xf32>
    %1 = vector.shape_cast %0 : vector<2x8x32xf32> to vector<16x32xf32>
    %c0_2 = arith.constant 0 : index
    %c0_3 = arith.constant 0 : index
    %2 = vector.load %arg2[%c0_2, %c0_3] : memref<32x96xf32, #tpu.memory_space<vmem>>, vector<32x96xf32>
    %cst = arith.constant dense<0.000000e+00> : vector<16x96xf32>
    %3 = tpu.matmul %1, %2, %cst {dimension_numbers = #tpu.dot_dimension_numbers<[1], [0], [0], [1], [0, 0, 1, 1], [], []>} : vector<16x32xf32>, vector<32x96xf32>, vector<16x96xf32> -> vector<16x96xf32>
    %4 = vector.shape_cast %3 : vector<16x96xf32> to vector<2x8x96xf32>
    %5 = vector.extract_strided_slice %4 {offsets = [0, 0, 0], sizes = [2, 8, 32], strides = [1, 1, 1]} : vector<2x8x96xf32> to vector<2x8x32xf32>
    %cst_4 = arith.constant 0.353553385 : f32
    %6 = vector.broadcast %cst_4 : f32 to vector<2x8x32xf32>
    %7 = arith.mulf %5, %6 : vector<2x8x32xf32>
    %8 = vector.extract_strided_slice %4 {offsets = [0, 0, 32], sizes = [2, 8, 32], strides = [1, 1, 1]} : vector<2x8x96xf32> to vector<2x8x32xf32>
    %9 = vector.extract_strided_slice %4 {offsets = [0, 0, 64], sizes = [2, 8, 32], strides = [1, 1, 1]} : vector<2x8x96xf32> to vector<2x8x32xf32>
    %10 = vector.extract_strided_slice %7 {offsets = [0, 0, 0], sizes = [2, 8, 8], strides = [1, 1, 1]} : vector<2x8x32xf32> to vector<2x8x8xf32>
    %11 = vector.extract_strided_slice %8 {offsets = [0, 0, 0], sizes = [2, 8, 8], strides = [1, 1, 1]} : vector<2x8x32xf32> to vector<2x8x8xf32>
    %12 = vector.extract_strided_slice %9 {offsets = [0, 0, 0], sizes = [2, 8, 8], strides = [1, 1, 1]} : vector<2x8x32xf32> to vector<2x8x8xf32>
    "tpu.trace_start"() <{level = 10 : i32, message = "bqd,bkd->bqk"}> : () -> ()
    %cst_5 = arith.constant dense<0.000000e+00> : vector<2x8x8xf32>
    %13 = tpu.matmul %10, %11, %cst_5 {dimension_numbers = #tpu.dot_dimension_numbers<[2], [2], [1], [1], [0, 0, 0, 1, 1, 1], [0], [0]>} : vector<2x8x8xf32>, vector<2x8x8xf32>, vector<2x8x8xf32> -> vector<2x8x8xf32>
    "tpu.trace_stop"() : () -> ()
    %cst_6 = arith.constant dense<0xFF800000> : vector<2x8xf32>
    %14 = vector.multi_reduction <maximumf>, %13, %cst_6 [2] : vector<2x8x8xf32> to vector<2x8xf32>
    %15 = vector.shape_cast %14 : vector<2x8xf32> to vector<2x8x1xf32>
    %16 = vector.broadcast %15 : vector<2x8x1xf32> to vector<2x8x8xf32>
    %17 = arith.subf %13, %16 : vector<2x8x8xf32>
    %18 = math.exp %17 : vector<2x8x8xf32>
    %cst_7 = arith.constant dense<0.000000e+00> : vector<2x8xf32>
    %19 = vector.multi_reduction <add>, %18, %cst_7 [2] : vector<2x8x8xf32> to vector<2x8xf32>
    %20 = vector.shape_cast %19 : vector<2x8xf32> to vector<2x8x1xf32>
    %21 = tpu.reciprocal %20 {approx = true} : vector<2x8x1xf32> -> vector<2x8x1xf32>
    %22 = vector.broadcast %21 : vector<2x8x1xf32> to vector<2x8x8xf32>
    %23 = arith.mulf %18, %22 : vector<2x8x8xf32>
    "tpu.trace_start"() <{level = 10 : i32, message = "bqk,bkd->bqd"}> : () -> ()
    %cst_8 = arith.constant dense<0.000000e+00> : vector<2x8x8xf32>
    %24 = tpu.matmul %23, %12, %cst_8 {dimension_numbers = #tpu.dot_dimension_numbers<[2], [1], [1], [2], [0, 0, 0, 1, 1, 2], [0], [0]>} : vector<2x8x8xf32>, vector<2x8x8xf32>, vector<2x8x8xf32> -> vector<2x8x8xf32>
    "tpu.trace_stop"() : () -> ()
    %25 = vector.shape_cast %24 : vector<2x8x8xf32> to vector<16x8xf32>
    %c0_9 = arith.constant 0 : index
    %c0_10 = arith.constant 0 : index
    %26 = vector.load %arg14[%c0_9, %c0_10] : memref<16x32xf32, #tpu.memory_space<vmem>>, vector<16x8xf32>
    tpu.vector_store %arg14[%c0_9, %c0_10], %25 {strides = array<i32>} : memref<16x32xf32, #tpu.memory_space<vmem>>, vector<16x8xf32>,
    %27 = vector.extract_strided_slice %7 {offsets = [0, 0, 8], sizes = [2, 8, 8], strides = [1, 1, 1]} : vector<2x8x32xf32> to vector<2x8x8xf32>
    %28 = vector.extract_strided_slice %8 {offsets = [0, 0, 8], sizes = [2, 8, 8], strides = [1, 1, 1]} : vector<2x8x32xf32> to vector<2x8x8xf32>
    %29 = vector.extract_strided_slice %9 {offsets = [0, 0, 8], sizes = [2, 8, 8], strides = [1, 1, 1]} : vector<2x8x32xf32> to vector<2x8x8xf32>
    "tpu.trace_start"() <{level = 10 : i32, message = "bqd,bkd->bqk"}> : () -> ()
    %cst_11 = arith.constant dense<0.000000e+00> : vector<2x8x8xf32>
    %30 = tpu.matmul %27, %28, %cst_11 {dimension_numbers = #tpu.dot_dimension_numbers<[2], [2], [1], [1], [0, 0, 0, 1, 1, 1], [0], [0]>} : vector<2x8x8xf32>, vector<2x8x8xf32>, vector<2x8x8xf32> -> vector<2x8x8xf32>
    "tpu.trace_stop"() : () -> ()
    %cst_12 = arith.constant dense<0xFF800000> : vector<2x8xf32>
    %31 = vector.multi_reduction <maximumf>, %30, %cst_12 [2] : vector<2x8x8xf32> to vector<2x8xf32>
    %32 = vector.shape_cast %31 : vector<2x8xf32> to vector<2x8x1xf32>
    %33 = vector.broadcast %32 : vector<2x8x1xf32> to vector<2x8x8xf32>
    %34 = arith.subf %30, %33 : vector<2x8x8xf32>
    %35 = math.exp %34 : vector<2x8x8xf32>
    %cst_13 = arith.constant dense<0.000000e+00> : vector<2x8xf32>
    %36 = vector.multi_reduction <add>, %35, %cst_13 [2] : vector<2x8x8xf32> to vector<2x8xf32>
    %37 = vector.shape_cast %36 : vector<2x8xf32> to vector<2x8x1xf32>
    %38 = tpu.reciprocal %37 {approx = true} : vector<2x8x1xf32> -> vector<2x8x1xf32>
    %39 = vector.broadcast %38 : vector<2x8x1xf32> to vector<2x8x8xf32>
    %40 = arith.mulf %35, %39 : vector<2x8x8xf32>
    "tpu.trace_start"() <{level = 10 : i32, message = "bqk,bkd->bqd"}> : () -> ()
    %cst_14 = arith.constant dense<0.000000e+00> : vector<2x8x8xf32>
    %41 = tpu.matmul %40, %29, %cst_14 {dimension_numbers = #tpu.dot_dimension_numbers<[2], [1], [1], [2], [0, 0, 0, 1, 1, 2], [0], [0]>} : vector<2x8x8xf32>, vector<2x8x8xf32>, vector<2x8x8xf32> -> vector<2x8x8xf32>
    "tpu.trace_stop"() : () -> ()
    %42 = vector.shape_cast %41 : vector<2x8x8xf32> to vector<16x8xf32>
    %c0_15 = arith.constant 0 : index
    %c8 = arith.constant 8 : index
    %43 = vector.load %arg14[%c0_15, %c8] : memref<16x32xf32, #tpu.memory_space<vmem>>, vector<16x8xf32>
    tpu.vector_store %arg14[%c0_15, %c8], %42 {strides = array<i32>} : memref<16x32xf32, #tpu.memory_space<vmem>>, vector<16x8xf32>,
    %44 = vector.extract_strided_slice %7 {offsets = [0, 0, 16], sizes = [2, 8, 8], strides = [1, 1, 1]} : vector<2x8x32xf32> to vector<2x8x8xf32>
    %45 = vector.extract_strided_slice %8 {offsets = [0, 0, 16], sizes = [2, 8, 8], strides = [1, 1, 1]} : vector<2x8x32xf32> to vector<2x8x8xf32>
    %46 = vector.extract_strided_slice %9 {offsets = [0, 0, 16], sizes = [2, 8, 8], strides = [1, 1, 1]} : vector<2x8x32xf32> to vector<2x8x8xf32>
    "tpu.trace_start"() <{level = 10 : i32, message = "bqd,bkd->bqk"}> : () -> ()
    %cst_16 = arith.constant dense<0.000000e+00> : vector<2x8x8xf32>
    %47 = tpu.matmul %44, %45, %cst_16 {dimension_numbers = #tpu.dot_dimension_numbers<[2], [2], [1], [1], [0, 0, 0, 1, 1, 1], [0], [0]>} : vector<2x8x8xf32>, vector<2x8x8xf32>, vector<2x8x8xf32> -> vector<2x8x8xf32>
    "tpu.trace_stop"() : () -> ()
    %cst_17 = arith.constant dense<0xFF800000> : vector<2x8xf32>
    %48 = vector.multi_reduction <maximumf>, %47, %cst_17 [2] : vector<2x8x8xf32> to vector<2x8xf32>
    %49 = vector.shape_cast %48 : vector<2x8xf32> to vector<2x8x1xf32>
    %50 = vector.broadcast %49 : vector<2x8x1xf32> to vector<2x8x8xf32>
    %51 = arith.subf %47, %50 : vector<2x8x8xf32>
    %52 = math.exp %51 : vector<2x8x8xf32>
    %cst_18 = arith.constant dense<0.000000e+00> : vector<2x8xf32>
    %53 = vector.multi_reduction <add>, %52, %cst_18 [2] : vector<2x8x8xf32> to vector<2x8xf32>
    %54 = vector.shape_cast %53 : vector<2x8xf32> to vector<2x8x1xf32>
    %55 = tpu.reciprocal %54 {approx = true} : vector<2x8x1xf32> -> vector<2x8x1xf32>
    %56 = vector.broadcast %55 : vector<2x8x1xf32> to vector<2x8x8xf32>
    %57 = arith.mulf %52, %56 : vector<2x8x8xf32>
    "tpu.trace_start"() <{level = 10 : i32, message = "bqk,bkd->bqd"}> : () -> ()
    %cst_19 = arith.constant dense<0.000000e+00> : vector<2x8x8xf32>
    %58 = tpu.matmul %57, %46, %cst_19 {dimension_numbers = #tpu.dot_dimension_numbers<[2], [1], [1], [2], [0, 0, 0, 1, 1, 2], [0], [0]>} : vector<2x8x8xf32>, vector<2x8x8xf32>, vector<2x8x8xf32> -> vector<2x8x8xf32>
    "tpu.trace_stop"() : () -> ()
    %59 = vector.shape_cast %58 : vector<2x8x8xf32> to vector<16x8xf32>
    %c0_20 = arith.constant 0 : index
    %c16 = arith.constant 16 : index
    %60 = vector.load %arg14[%c0_20, %c16] : memref<16x32xf32, #tpu.memory_space<vmem>>, vector<16x8xf32>
    tpu.vector_store %arg14[%c0_20, %c16], %59 {strides = array<i32>} : memref<16x32xf32, #tpu.memory_space<vmem>>, vector<16x8xf32>,
    %61 = vector.extract_strided_slice %7 {offsets = [0, 0, 24], sizes = [2, 8, 8], strides = [1, 1, 1]} : vector<2x8x32xf32> to vector<2x8x8xf32>
    %62 = vector.extract_strided_slice %8 {offsets = [0, 0, 24], sizes = [2, 8, 8], strides = [1, 1, 1]} : vector<2x8x32xf32> to vector<2x8x8xf32>
    %63 = vector.extract_strided_slice %9 {offsets = [0, 0, 24], sizes = [2, 8, 8], strides = [1, 1, 1]} : vector<2x8x32xf32> to vector<2x8x8xf32>
    "tpu.trace_start"() <{level = 10 : i32, message = "bqd,bkd->bqk"}> : () -> ()
    %cst_21 = arith.constant dense<0.000000e+00> : vector<2x8x8xf32>
    %64 = tpu.matmul %61, %62, %cst_21 {dimension_numbers = #tpu.dot_dimension_numbers<[2], [2], [1], [1], [0, 0, 0, 1, 1, 1], [0], [0]>} : vector<2x8x8xf32>, vector<2x8x8xf32>, vector<2x8x8xf32> -> vector<2x8x8xf32>
    "tpu.trace_stop"() : () -> ()
    %cst_22 = arith.constant dense<0xFF800000> : vector<2x8xf32>
    %65 = vector.multi_reduction <maximumf>, %64, %cst_22 [2] : vector<2x8x8xf32> to vector<2x8xf32>
    %66 = vector.shape_cast %65 : vector<2x8xf32> to vector<2x8x1xf32>
    %67 = vector.broadcast %66 : vector<2x8x1xf32> to vector<2x8x8xf32>
    %68 = arith.subf %64, %67 : vector<2x8x8xf32>
    %69 = math.exp %68 : vector<2x8x8xf32>
    %cst_23 = arith.constant dense<0.000000e+00> : vector<2x8xf32>
    %70 = vector.multi_reduction <add>, %69, %cst_23 [2] : vector<2x8x8xf32> to vector<2x8xf32>
    %71 = vector.shape_cast %70 : vector<2x8xf32> to vector<2x8x1xf32>
    %72 = tpu.reciprocal %71 {approx = true} : vector<2x8x1xf32> -> vector<2x8x1xf32>
    %73 = vector.broadcast %72 : vector<2x8x1xf32> to vector<2x8x8xf32>
    %74 = arith.mulf %69, %73 : vector<2x8x8xf32>
    "tpu.trace_start"() <{level = 10 : i32, message = "bqk,bkd->bqd"}> : () -> ()
    %cst_24 = arith.constant dense<0.000000e+00> : vector<2x8x8xf32>
    %75 = tpu.matmul %74, %63, %cst_24 {dimension_numbers = #tpu.dot_dimension_numbers<[2], [1], [1], [2], [0, 0, 0, 1, 1, 2], [0], [0]>} : vector<2x8x8xf32>, vector<2x8x8xf32>, vector<2x8x8xf32> -> vector<2x8x8xf32>
    "tpu.trace_stop"() : () -> ()
    %76 = vector.shape_cast %75 : vector<2x8x8xf32> to vector<16x8xf32>
    %c0_25 = arith.constant 0 : index
    %c24 = arith.constant 24 : index
    %77 = vector.load %arg14[%c0_25, %c24] : memref<16x32xf32, #tpu.memory_space<vmem>>, vector<16x8xf32>
    tpu.vector_store %arg14[%c0_25, %c24], %76 {strides = array<i32>} : memref<16x32xf32, #tpu.memory_space<vmem>>, vector<16x8xf32>,
    %c0_26 = arith.constant 0 : index
    %c0_27 = arith.constant 0 : index
    %78 = vector.load %arg14[%c0_26, %c0_27] : memref<16x32xf32, #tpu.memory_space<vmem>>, vector<16x32xf32>
    %c0_28 = arith.constant 0 : index
    %c0_29 = arith.constant 0 : index
    %79 = vector.load %arg3[%c0_28, %c0_29] : memref<32x32xf32, #tpu.memory_space<vmem>>, vector<32x32xf32>
    %cst_30 = arith.constant dense<0.000000e+00> : vector<16x32xf32>
    %80 = tpu.matmul %78, %79, %cst_30 {dimension_numbers = #tpu.dot_dimension_numbers<[1], [0], [0], [1], [0, 0, 1, 1], [], []>} : vector<16x32xf32>, vector<32x32xf32>, vector<16x32xf32> -> vector<16x32xf32>
    %c0_31 = arith.constant 0 : index
    %c0_32 = arith.constant 0 : index
    %81 = vector.load %arg4[%c0_31, %c0_32] : memref<1x32xf32, #tpu.memory_space<vmem>>, vector<1x32xf32>
    %82 = vector.broadcast %81 : vector<1x32xf32> to vector<16x32xf32>
    %83 = arith.addf %80, %82 : vector<16x32xf32>
    %84 = arith.addf %1, %83 : vector<16x32xf32>
    %c0_33 = arith.constant 0 : index
    %c0_34 = arith.constant 0 : index
    %85 = vector.load %arg5[%c0_33, %c0_34] : memref<1x32xf32, #tpu.memory_space<vmem>>, vector<1x32xf32>
    %c0_35 = arith.constant 0 : index
    %c0_36 = arith.constant 0 : index
    %86 = vector.load %arg6[%c0_35, %c0_36] : memref<1x32xf32, #tpu.memory_space<vmem>>, vector<1x32xf32>
    %cst_37 = arith.constant dense<0.000000e+00> : vector<16xf32>
    %87 = vector.multi_reduction <add>, %84, %cst_37 [1] : vector<16x32xf32> to vector<16xf32>
    %88 = vector.shape_cast %87 : vector<16xf32> to vector<16x1xf32>
    %cst_38 = arith.constant 3.200000e+01 : f32
    %89 = vector.broadcast %cst_38 : f32 to vector<16x1xf32>
    %90 = arith.divf %88, %89 : vector<16x1xf32>
    %91 = vector.broadcast %90 : vector<16x1xf32> to vector<16x32xf32>
    %92 = arith.subf %84, %91 : vector<16x32xf32>
    %93 = arith.mulf %92, %92 : vector<16x32xf32>
    %cst_39 = arith.constant dense<0.000000e+00> : vector<16xf32>
    %94 = vector.multi_reduction <add>, %93, %cst_39 [1] : vector<16x32xf32> to vector<16xf32>
    %95 = vector.shape_cast %94 : vector<16xf32> to vector<16x1xf32>
    %cst_40 = arith.constant 3.200000e+01 : f32
    %96 = vector.broadcast %cst_40 : f32 to vector<16x1xf32>
    %97 = arith.divf %95, %96 : vector<16x1xf32>
    %cst_41 = arith.constant 9.99999997E-7 : f32
    %98 = vector.broadcast %cst_41 : f32 to vector<16x1xf32>
    %99 = arith.addf %97, %98 : vector<16x1xf32>
    %100 = math.rsqrt %99 : vector<16x1xf32>
    %101 = vector.broadcast %100 : vector<16x1xf32> to vector<16x32xf32>
    %102 = arith.mulf %92, %101 : vector<16x32xf32>
    %103 = vector.broadcast %85 : vector<1x32xf32> to vector<16x32xf32>
    %104 = arith.mulf %102, %103 : vector<16x32xf32>
    %105 = vector.broadcast %86 : vector<1x32xf32> to vector<16x32xf32>
    %106 = arith.addf %104, %105 : vector<16x32xf32>
    %c0_42 = arith.constant 0 : index
    %c0_43 = arith.constant 0 : index
    %107 = vector.load %arg7[%c0_42, %c0_43] : memref<32x64xf32, #tpu.memory_space<vmem>>, vector<32x64xf32>
    %cst_44 = arith.constant dense<0.000000e+00> : vector<16x64xf32>
    %108 = tpu.matmul %106, %107, %cst_44 {dimension_numbers = #tpu.dot_dimension_numbers<[1], [0], [0], [1], [0, 0, 1, 1], [], []>} : vector<16x32xf32>, vector<32x64xf32>, vector<16x64xf32> -> vector<16x64xf32>
    %c0_45 = arith.constant 0 : index
    %c0_46 = arith.constant 0 : index
    %109 = vector.load %arg8[%c0_45, %c0_46] : memref<1x64xf32, #tpu.memory_space<vmem>>, vector<1x64xf32>
    %110 = vector.broadcast %109 : vector<1x64xf32> to vector<16x64xf32>
    %111 = arith.addf %108, %110 : vector<16x64xf32>
    %cst_47 = arith.constant 0.000000e+00 : f32
    %112 = vector.broadcast %cst_47 : f32 to vector<16x64xf32>
    %113 = arith.maximumf %111, %112 : vector<16x64xf32>
    %c0_48 = arith.constant 0 : index
    %c0_49 = arith.constant 0 : index
    %114 = vector.load %arg9[%c0_48, %c0_49] : memref<64x32xf32, #tpu.memory_space<vmem>>, vector<64x32xf32>
    %cst_50 = arith.constant dense<0.000000e+00> : vector<16x32xf32>
    %115 = tpu.matmul %113, %114, %cst_50 {dimension_numbers = #tpu.dot_dimension_numbers<[1], [0], [0], [1], [0, 0, 1, 1], [], []>} : vector<16x64xf32>, vector<64x32xf32>, vector<16x32xf32> -> vector<16x32xf32>
    %c0_51 = arith.constant 0 : index
    %c0_52 = arith.constant 0 : index
    %116 = vector.load %arg10[%c0_51, %c0_52] : memref<1x32xf32, #tpu.memory_space<vmem>>, vector<1x32xf32>
    %117 = vector.broadcast %116 : vector<1x32xf32> to vector<16x32xf32>
    %118 = arith.addf %115, %117 : vector<16x32xf32>
    %119 = arith.addf %106, %118 : vector<16x32xf32>
    %c0_53 = arith.constant 0 : index
    %c0_54 = arith.constant 0 : index
    %120 = vector.load %arg11[%c0_53, %c0_54] : memref<1x32xf32, #tpu.memory_space<vmem>>, vector<1x32xf32>
    %c0_55 = arith.constant 0 : index
    %c0_56 = arith.constant 0 : index
    %121 = vector.load %arg12[%c0_55, %c0_56] : memref<1x32xf32, #tpu.memory_space<vmem>>, vector<1x32xf32>
    %cst_57 = arith.constant dense<0.000000e+00> : vector<16xf32>
    %122 = vector.multi_reduction <add>, %119, %cst_57 [1] : vector<16x32xf32> to vector<16xf32>
    %123 = vector.shape_cast %122 : vector<16xf32> to vector<16x1xf32>
    %cst_58 = arith.constant 3.200000e+01 : f32
    %124 = vector.broadcast %cst_58 : f32 to vector<16x1xf32>
    %125 = arith.divf %123, %124 : vector<16x1xf32>
    %126 = vector.broadcast %125 : vector<16x1xf32> to vector<16x32xf32>
    %127 = arith.subf %119, %126 : vector<16x32xf32>
    %128 = arith.mulf %127, %127 : vector<16x32xf32>
    %cst_59 = arith.constant dense<0.000000e+00> : vector<16xf32>
    %129 = vector.multi_reduction <add>, %128, %cst_59 [1] : vector<16x32xf32> to vector<16xf32>
    %130 = vector.shape_cast %129 : vector<16xf32> to vector<16x1xf32>
    %cst_60 = arith.constant 3.200000e+01 : f32
    %131 = vector.broadcast %cst_60 : f32 to vector<16x1xf32>
    %132 = arith.divf %130, %131 : vector<16x1xf32>
    %cst_61 = arith.constant 9.99999997E-7 : f32
    %133 = vector.broadcast %cst_61 : f32 to vector<16x1xf32>
    %134 = arith.addf %132, %133 : vector<16x1xf32>
    %135 = math.rsqrt %134 : vector<16x1xf32>
    %136 = vector.broadcast %135 : vector<16x1xf32> to vector<16x32xf32>
    %137 = arith.mulf %127, %136 : vector<16x32xf32>
    %138 = vector.broadcast %120 : vector<1x32xf32> to vector<16x32xf32>
    %139 = arith.mulf %137, %138 : vector<16x32xf32>
    %140 = vector.broadcast %121 : vector<1x32xf32> to vector<16x32xf32>
    %141 = arith.addf %139, %140 : vector<16x32xf32>
    %142 = vector.shape_cast %141 : vector<16x32xf32> to vector<2x8x32xf32>
    %c0_62 = arith.constant 0 : index
    %c0_63 = arith.constant 0 : index
    %c0_64 = arith.constant 0 : index
    %143 = vector.load %arg13[%c0_62, %c0_63, %c0_64] : memref<2x8x32xf32, #tpu.memory_space<vmem>>, vector<2x8x32xf32>
    tpu.vector_store %arg13[%c0_62, %c0_63, %c0_64], %142 {strides = array<i32>} : memref<2x8x32xf32, #tpu.memory_space<vmem>>, vector<2x8x32xf32>,
    return
  }
  func.func @transform_0(%arg0: i32) -> (i32, i32, i32) {
    %c0_i32 = arith.constant 0 : i32
    %c0_i32_0 = arith.constant 0 : i32
    %c0_i32_1 = arith.constant 0 : i32
    return %arg0, %c0_i32, %c0_i32_0 : i32, i32, i32
  }
  func.func @transform_1(%arg0: i32) -> (i32, i32) {
    %c0_i32 = arith.constant 0 : i32
    %c0_i32_0 = arith.constant 0 : i32
    %c0_i32_1 = arith.constant 0 : i32
    return %c0_i32, %c0_i32_0 : i32, i32
  }
  func.func @transform_2(%arg0: i32) -> (i32, i32) {
    %c0_i32 = arith.constant 0 : i32
    %c0_i32_0 = arith.constant 0 : i32
    %c0_i32_1 = arith.constant 0 : i32
    return %c0_i32, %c0_i32_0 : i32, i32
  }
  func.func @transform_3(%arg0: i32) -> (i32, i32) {
    %c0_i32 = arith.constant 0 : i32
    %c0_i32_0 = arith.constant 0 : i32
    %c0_i32_1 = arith.constant 0 : i32
    return %c0_i32, %c0_i32_0 : i32, i32
  }
  func.func @transform_4(%arg0: i32) -> (i32, i32) {
    %c0_i32 = arith.constant 0 : i32
    %c0_i32_0 = arith.constant 0 : i32
    %c0_i32_1 = arith.constant 0 : i32
    return %c0_i32, %c0_i32_0 : i32, i32
  }
  func.func @transform_5(%arg0: i32) -> (i32, i32) {
    %c0_i32 = arith.constant 0 : i32
    %c0_i32_0 = arith.constant 0 : i32
    %c0_i32_1 = arith.constant 0 : i32
    return %c0_i32, %c0_i32_0 : i32, i32
  }
  func.func @transform_6(%arg0: i32) -> (i32, i32) {
    %c0_i32 = arith.constant 0 : i32
    %c0_i32_0 = arith.constant 0 : i32
    %c0_i32_1 = arith.constant 0 : i32
    return %c0_i32, %c0_i32_0 : i32, i32
  }
  func.func @transform_7(%arg0: i32) -> (i32, i32) {
    %c0_i32 = arith.constant 0 : i32
    %c0_i32_0 = arith.constant 0 : i32
    %c0_i32_1 = arith.constant 0 : i32
    return %c0_i32, %c0_i32_0 : i32, i32
  }
  func.func @transform_8(%arg0: i32) -> (i32, i32) {
    %c0_i32 = arith.constant 0 : i32
    %c0_i32_0 = arith.constant 0 : i32
    %c0_i32_1 = arith.constant 0 : i32
    return %c0_i32, %c0_i32_0 : i32, i32
  }
  func.func @transform_9(%arg0: i32) -> (i32, i32) {
    %c0_i32 = arith.constant 0 : i32
    %c0_i32_0 = arith.constant 0 : i32
    %c0_i32_1 = arith.constant 0 : i32
    return %c0_i32, %c0_i32_0 : i32, i32
  }
  func.func @transform_10(%arg0: i32) -> (i32, i32) {
    %c0_i32 = arith.constant 0 : i32
    %c0_i32_0 = arith.constant 0 : i32
    %c0_i32_1 = arith.constant 0 : i32
    return %c0_i32, %c0_i32_0 : i32, i32
  }
  func.func @transform_11(%arg0: i32) -> (i32, i32) {
    %c0_i32 = arith.constant 0 : i32
    %c0_i32_0 = arith.constant 0 : i32
    %c0_i32_1 = arith.constant 0 : i32
    return %c0_i32, %c0_i32_0 : i32, i32
  }
  func.func @transform_12(%arg0: i32) -> (i32, i32, i32) {
    %c0_i32 = arith.constant 0 : i32
    %c0_i32_0 = arith.constant 0 : i32
    %c0_i32_1 = arith.constant 0 : i32
    return %arg0, %c0_i32, %c0_i32_0 : i32, i32, i32
  }
}

</mosaic_0001>

<llo_original>
// kernel: transformer_classifier_forward.5
$region0: #{transformer_classifier_forward.5}
  #allocation0 [shape = 'u32[]', space=smem, size = 0x4, offset = 0x4, fixed_abs, tag = 'smem constant byte address 0x4 - core index']
  #allocation1 [shape = 'u32[144,128]{1,0:T(1,128)}', space=vmem, size = 0x12000, scoped, tag = 'internal scratch']
  %s0 = inlined_call_operand.vmem [shape: f32[2,8,32], index: 0, kind: input, shape index: {}]
  %s1 = inlined_call_operand.vmem [shape: f32[32,2], index: 1, kind: input, shape index: {}]
  %s2 = inlined_call_operand.hbm [shape: f32[1,2], index: 2, kind: input, shape index: {}]
  %s3 = inlined_call_operand.hbm [shape: f32[2,2], index: 3, kind: output, shape index: {}]
  %s4 = sld [smem:[#allocation0]]
  $region26: #{transformer_classifier_forward.5} parent=0
    _
  %s6 = ssub.s32 1, %s4
  %s7 = scalar_select 0, %s6, %s4
  $region1: #{transformer_classifier_forward.5} parent=0
    #allocation2 [shape = 'u8[512]{0}', space=vmem, size = 0x400, scoped, tag = 'input window, operand 2, single buffered']
    #allocation3 [shape = 's32[1]{0}', space=sflag, size = 0x4, scoped, tag = 'scoped memory for transformer_classifier_forward.5']
    #allocation4 [shape = 's32[1]{0}', space=sflag, size = 0x4, scoped, tag = 'scoped memory for transformer_classifier_forward.5']
    #allocation5 [shape = 'u8[1024]{0}', space=vmem, size = 0x400, scoped, tag = 'output window, operand 0, single buffered']
    %8 = vsyncpa [#allocation3], 0
    %9 = vsyncpa [#allocation4], 0
    // Predicated region
    $region2: #{transformer_classifier_forward.5} parent=1 // pred_check
      _
    $region3: #{transformer_classifier_forward.5} parent=1 // pred_check_branch
      %11 = sbr.rel (0) target = $region5
    $region4: #{transformer_classifier_forward.5} parent=1 // pred_region
      _
    $region5: #{transformer_classifier_forward.5} parent=1 // pred_fallthru
      _
    // Predicated region
    $region6: #{transformer_classifier_forward.5} parent=1 // pred_check
      _
    $region7: #{transformer_classifier_forward.5} parent=1 // pred_check_branch
      %13 = sbr.rel (0) target = $region9
    $region8: #{transformer_classifier_forward.5} parent=1 // pred_region
      _
    $region9: #{transformer_classifier_forward.5} parent=1 // pred_fallthru
      _
    // Predicated region
    $region10: #{transformer_classifier_forward.5} parent=1 // pred_check
      _
    $region11: #{transformer_classifier_forward.5} parent=1 // pred_check_branch
      %15 = sbr.rel (0) target = $region13
    $region12: #{transformer_classifier_forward.5} parent=1 // pred_region
      %s17 = ssub.s32 16, 16
      %18 = vsyncadd [#allocation3], %s17
      %s20 = sshll.u32 [#allocation2], 4
      %s21 = int_to_ptr.vmem [resolvable:$true] %s20
      %23 = dma.hbm_to_vmem [thread:$0]  %s2, 16, %s21, [#allocation3]
    $region13: #{transformer_classifier_forward.5} parent=1 // pred_fallthru
      _
    // Predicated region
    $region14: #{transformer_classifier_forward.5} parent=1 // pred_check
      _
    $region15: #{transformer_classifier_forward.5} parent=1 // pred_check_branch
      %25 = sbr.rel (0) target = $region17
    $region16: #{transformer_classifier_forward.5} parent=1 // pred_region
      %26 = dma.done [#allocation3], 16
    $region17: #{transformer_classifier_forward.5} parent=1 // pred_fallthru
      _
    %v27 = vld [vmem:[%s0] sm:$0xff]
    %v28 = vld [vmem:[%s0 + $0x8] sm:$0xff]
    %v31 = vrot.slane %v27, 1
    %v32 = vrot.slane %v28, 1
    %v35 = vmax.f32 %v27, %v31
    %v36 = vmax.f32 %v28, %v32
    %v37 = vrot.slane %v27, 2
    %v38 = vrot.slane %v28, 2
    %v41 = vmax.f32 %v35, %v37
    %v42 = vmax.f32 %v36, %v38
    %v43 = vrot.slane %v27, 3
    %v44 = vrot.slane %v28, 3
    %v47 = vmax.f32 %v41, %v43
    %v48 = vmax.f32 %v42, %v44
    %v49 = vrot.slane %v27, 4
    %v50 = vrot.slane %v28, 4
    %v53 = vmax.f32 %v47, %v49
    %v54 = vmax.f32 %v48, %v50
    %v55 = vrot.slane %v27, 5
    %v56 = vrot.slane %v28, 5
    %v59 = vmax.f32 %v53, %v55
    %v60 = vmax.f32 %v54, %v56
    %v61 = vrot.slane %v27, 6
    %v62 = vrot.slane %v28, 6
    %v65 = vmax.f32 %v59, %v61
    %v66 = vmax.f32 %v60, %v62
    %v67 = vrot.slane %v27, 7
    %v68 = vrot.slane %v28, 7
    %v71 = vmax.f32 %v65, %v67
    %v72 = vmax.f32 %v66, %v68
    %v73 = vld [vmem:[%s1] sm:$0xff]
    %v74 = vld [vmem:[%s1 + $0x8] sm:$0xff]
    %v75 = vld [vmem:[%s1 + $0x10] sm:$0xff]
    %v76 = vld [vmem:[%s1 + $0x18] sm:$0xff]
    %v77 = vld [vmem:[#allocation2] sm:$0x1]
    %v79 = vlaneseq
    %v80 = vshrl.u32 %v79, 7
    %v81 = vsub.s32 0, %v80
    %v82 = vrot.slane %v77, %v81
    %v86 = vrot.slane %v72, 7
    %vm87 = vcmask 1041409
    %v88 = vsel %vm87, %v86, %v71
    %vm89 = vcmask 261120
    %v90 = vsel %vm89, %v88, 0
    %92 = vmatprep.subr.mxu0 0.0
    %93 = vmatpush1.msra.mxu0 0.0
    %94 = vmatprep.subr.mxu0 0.0
    %95 = vmatpush1.msra.mxu0 0.0
    %96 = vmatprep.subr.mxu0 0.0
    %97 = vmatpush1.msra.mxu0 0.0
    %98 = vmatprep.subr.mxu0 0.0
    %99 = vmatpush1.msra.mxu0 0.0
    %100 = vmatprep.subr.mxu0 0.0
    %101 = vmatpush1.msra.mxu0 0.0
    %102 = vmatprep.subr.mxu0 0.0
    %103 = vmatpush1.msra.mxu0 0.0
    %104 = vmatprep.subr.mxu0 0.0
    %105 = vmatpush1.msra.mxu0 0.0
    %106 = vmatprep.subr.mxu0 0.0
    %107 = vmatpush1.msra.mxu0 0.0
    %108 = vmatprep.subr.mxu0 0.0
    %109 = vmatpush1.msra.mxu0 0.0
    %110 = vmatprep.subr.mxu0 0.0
    %111 = vmatpush1.msra.mxu0 0.0
    %112 = vmatprep.subr.mxu0 0.0
    %113 = vmatpush1.msra.mxu0 0.0
    %114 = vmatprep.subr.mxu0 0.0
    %115 = vmatpush1.msra.mxu0 0.0
    %116 = vmatprep.subr.mxu0 0.0
    %117 = vmatpush1.msra.mxu0 %v76
    %118 = vmatprep.subr.mxu0 0.0
    %119 = vmatpush1.msra.mxu0 %v75
    %120 = vmatprep.subr.mxu0 0.0
    %121 = vmatpush1.msra.mxu0 %v74
    %122 = vmatprep.subr.mxu0 0.0
    %123 = vmatpush1.msra.mxu0 %v73
    %124 = vmatprep.subr.mxu0 0.0
    %125 = vmatpush2.msra.mxu0 0.0
    %126 = vmatprep.subr.mxu0 0.0
    %127 = vmatpush2.msra.mxu0 0.0
    %128 = vmatprep.subr.mxu0 0.0
    %129 = vmatpush2.msra.mxu0 0.0
    %130 = vmatprep.subr.mxu0 0.0
    %131 = vmatpush2.msra.mxu0 0.0
    %132 = vmatprep.subr.mxu0 0.0
    %133 = vmatpush2.msra.mxu0 0.0
    %134 = vmatprep.subr.mxu0 0.0
    %135 = vmatpush2.msra.mxu0 0.0
    %136 = vmatprep.subr.mxu0 0.0
    %137 = vmatpush2.msra.mxu0 0.0
    %138 = vmatprep.subr.mxu0 0.0
    %139 = vmatpush2.msra.mxu0 0.0
    %140 = vmatprep.subr.mxu0 0.0
    %141 = vmatpush2.msra.mxu0 0.0
    %142 = vmatprep.subr.mxu0 0.0
    %143 = vmatpush2.msra.mxu0 0.0
    %144 = vmatprep.subr.mxu0 0.0
    %145 = vmatpush2.msra.mxu0 0.0
    %146 = vmatprep.subr.mxu0 0.0
    %147 = vmatpush2.msra.mxu0 0.0
    %148 = vmatprep.subr.mxu0 0.0
    %149 = vmatpush2.msra.mxu0 0.0
    %150 = vmatprep.subr.mxu0 0.0
    %151 = vmatpush2.msra.mxu0 0.0
    %152 = vmatprep.subr.mxu0 0.0
    %153 = vmatpush2.msra.mxu0 0.0
    %154 = vmatprep.subr.mxu0 0.0
    %155 = vmatpush2.msra.mxu0 0.0
    %156 = vmatprep.mubr.f32.mxu0 0.0
    %157 = vmatmul.mubr.f32.gmra.mxu0 %v90
    %v158 = vpop.f32.mrf.mxu0
    %v159 = vadd.f32 %v82, %v158
    %v160 = vpop.f32.mrf.mxu0
    %161 = vdwg.mxu0
    %vm162 = vcmask 9216
    %163 = vst.msk [vmem:[#allocation5] sm:$0x3] %vm162, %v159
    // Predicated region
    $region18: #{transformer_classifier_forward.5} parent=1 // pred_check
      _
    $region19: #{transformer_classifier_forward.5} parent=1 // pred_check_branch
      %165 = sbr.rel (0) target = $region21
    $region20: #{transformer_classifier_forward.5} parent=1 // pred_region
      %s167 = ssub.s32 32, 32
      %168 = vsyncadd [#allocation4], %s167
      %s170 = sshll.u32 [#allocation5], 4
      %s171 = int_to_ptr.vmem [resolvable:$true] %s170
      %173 = dma.vmem_to_hbm [thread:$0]  %s171, 32, %s3, [#allocation4]
    $region21: #{transformer_classifier_forward.5} parent=1 // pred_fallthru
      _
    // Predicated region
    $region22: #{transformer_classifier_forward.5} parent=1 // pred_check
      _
    $region23: #{transformer_classifier_forward.5} parent=1 // pred_check_branch
      %175 = sbr.rel (0) target = $region25
    $region24: #{transformer_classifier_forward.5} parent=1 // pred_region
      %176 = dma.done [#allocation4], 32
    $region25: #{transformer_classifier_forward.5} parent=1 // pred_fallthru
      _
    %177 = vsyncpa [#allocation3], 1
    %178 = vsyncpa [#allocation4], 1

// kernel: transformer_classifier_forward.3
$region0: #{transformer_classifier_forward.3}
  #allocation0 [shape = 'u32[]', space=smem, size = 0x4, offset = 0x4, fixed_abs, tag = 'smem constant byte address 0x4 - core index']
  #allocation1 [shape = 'u32[144,128]{1,0:T(1,128)}', space=vmem, size = 0x12000, scoped, tag = 'internal scratch']
  #allocation2 [shape = 'f32[16,32]{1,0:T(8,128)}', space=vmem, size = 0x2000, scoped, tag = 'scratch operand']
  %s0 = inlined_call_operand.vmem [shape: f32[2,8,32], index: 0, kind: input, shape index: {}]
  %s1 = inlined_call_operand.vmem [shape: f32[32,96], index: 1, kind: input, shape index: {}]
  %s2 = inlined_call_operand.hbm [shape: f32[32,32], index: 2, kind: input, shape index: {}]
  %s3 = inlined_call_operand.hbm [shape: f32[1,32], index: 3, kind: input, shape index: {}]
  %s4 = inlined_call_operand.hbm [shape: f32[1,32], index: 4, kind: input, shape index: {}]
  %s5 = inlined_call_operand.hbm [shape: f32[1,32], index: 5, kind: input, shape index: {}]
  %s6 = inlined_call_operand.hbm [shape: f32[32,64], index: 6, kind: input, shape index: {}]
  %s7 = inlined_call_operand.hbm [shape: f32[1,64], index: 7, kind: input, shape index: {}]
  %s8 = inlined_call_operand.vmem [shape: f32[64,32], index: 8, kind: input, shape index: {}]
  %s9 = inlined_call_operand.hbm [shape: f32[1,32], index: 9, kind: input, shape index: {}]
  %s10 = inlined_call_operand.hbm [shape: f32[1,32], index: 10, kind: input, shape index: {}]
  %s11 = inlined_call_operand.hbm [shape: f32[1,32], index: 11, kind: input, shape index: {}]
  %s12 = inlined_call_operand.vmem [shape: f32[2,8,32], index: 12, kind: output, shape index: {}]
  %s13 = sld [smem:[#allocation0]]
  $region94: #{transformer_classifier_forward.3} parent=0
    _
  %s15 = ssub.s32 1, %s13
  %s16 = scalar_select 0, %s15, %s13
  $region1: #{transformer_classifier_forward.3} parent=0
    #allocation3 [shape = 'u8[16384]{0}', space=vmem, size = 0x4000, scoped, tag = 'input window, operand 2, single buffered']
    #allocation4 [shape = 's32[1]{0}', space=sflag, size = 0x4, scoped, tag = 'scoped memory for transformer_classifier_forward.3']
    #allocation5 [shape = 'u8[512]{0}', space=vmem, size = 0x400, scoped, tag = 'input window, operand 3, single buffered']
    #allocation6 [shape = 's32[1]{0}', space=sflag, size = 0x4, scoped, tag = 'scoped memory for transformer_classifier_forward.3']
    #allocation7 [shape = 'u8[512]{0}', space=vmem, size = 0x400, scoped, tag = 'input window, operand 4, single buffered']
    #allocation8 [shape = 'u8[512]{0}', space=vmem, size = 0x400, scoped, tag = 'input window, operand 5, single buffered']
    #allocation9 [shape = 's32[1]{0}', space=sflag, size = 0x4, scoped, tag = 'scoped memory for transformer_classifier_forward.3']
    #allocation10 [shape = 'u8[16384]{0}', space=vmem, size = 0x4000, scoped, tag = 'input window, operand 6, single buffered']
    #allocation11 [shape = 'u8[512]{0}', space=vmem, size = 0x400, scoped, tag = 'input window, operand 7, single buffered']
    #allocation12 [shape = 's32[1]{0}', space=sflag, size = 0x4, scoped, tag = 'scoped memory for transformer_classifier_forward.3']
    #allocation13 [shape = 'u8[512]{0}', space=vmem, size = 0x400, scoped, tag = 'input window, operand 9, single buffered']
    #allocation14 [shape = 'u8[512]{0}', space=vmem, size = 0x400, scoped, tag = 'input window, operand 10, single buffered']
    #allocation15 [shape = 's32[1]{0}', space=sflag, size = 0x4, scoped, tag = 'scoped memory for transformer_classifier_forward.3']
    #allocation16 [shape = 'u8[512]{0}', space=vmem, size = 0x400, scoped, tag = 'input window, operand 11, single buffered']
    %17 = vsyncpa [#allocation4], 0
    %18 = vsyncpa [#allocation6], 0
    %19 = vsyncpa [#allocation9], 0
    %20 = vsyncpa [#allocation12], 0
    %21 = vsyncpa [#allocation15], 0
    // Predicated region
    $region2: #{transformer_classifier_forward.3} parent=1 // pred_check
      _
    $region3: #{transformer_classifier_forward.3} parent=1 // pred_check_branch
      %23 = sbr.rel (0) target = $region5
    $region4: #{transformer_classifier_forward.3} parent=1 // pred_region
      _
    $region5: #{transformer_classifier_forward.3} parent=1 // pred_fallthru
      _
    // Predicated region
    $region6: #{transformer_classifier_forward.3} parent=1 // pred_check
      _
    $region7: #{transformer_classifier_forward.3} parent=1 // pred_check_branch
      %25 = sbr.rel (0) target = $region9
    $region8: #{transformer_classifier_forward.3} parent=1 // pred_region
      _
    $region9: #{transformer_classifier_forward.3} parent=1 // pred_fallthru
      _
    // Predicated region
    $region10: #{transformer_classifier_forward.3} parent=1 // pred_check
      _
    $region11: #{transformer_classifier_forward.3} parent=1 // pred_check_branch
      %27 = sbr.rel (0) target = $region13
    $region12: #{transformer_classifier_forward.3} parent=1 // pred_region
      %s29 = ssub.s32 512, 512
      %30 = vsyncadd [#allocation4], %s29
      %s31 = sshll.u32 [#allocation3], 4
      %s32 = int_to_ptr.vmem [resolvable:$true] %s31
      %37 = dma.hbm_to_vmem [thread:$0]  %s2, 512, %s32, [#allocation4], 128, 128, 8
    $region13: #{transformer_classifier_forward.3} parent=1 // pred_fallthru
      _
    // Predicated region
    $region14: #{transformer_classifier_forward.3} parent=1 // pred_check
      _
    $region15: #{transformer_classifier_forward.3} parent=1 // pred_check_branch
      %39 = sbr.rel (0) target = $region17
    $region16: #{transformer_classifier_forward.3} parent=1 // pred_region
      %s41 = ssub.s32 16, 16
      %42 = vsyncadd [#allocation6], %s41
      %s44 = sshll.u32 [#allocation5], 4
      %s45 = int_to_ptr.vmem [resolvable:$true] %s44
      %47 = dma.hbm_to_vmem [thread:$0]  %s3, 16, %s45, [#allocation6]
    $region17: #{transformer_classifier_forward.3} parent=1 // pred_fallthru
      _
    // Predicated region
    $region18: #{transformer_classifier_forward.3} parent=1 // pred_check
      _
    $region19: #{transformer_classifier_forward.3} parent=1 // pred_check_branch
      %49 = sbr.rel (0) target = $region21
    $region20: #{transformer_classifier_forward.3} parent=1 // pred_region
      %s51 = ssub.s32 16, 16
      %52 = vsyncadd [#allocation6], %s51
      %s54 = sshll.u32 [#allocation7], 4
      %s55 = int_to_ptr.vmem [resolvable:$true] %s54
      %57 = dma.hbm_to_vmem [thread:$0]  %s4, 16, %s55, [#allocation6]
    $region21: #{transformer_classifier_forward.3} parent=1 // pred_fallthru
      _
    // Predicated region
    $region22: #{transformer_classifier_forward.3} parent=1 // pred_check
      _
    $region23: #{transformer_classifier_forward.3} parent=1 // pred_check_branch
      %59 = sbr.rel (0) target = $region25
    $region24: #{transformer_classifier_forward.3} parent=1 // pred_region
      %s61 = ssub.s32 16, 16
      %62 = vsyncadd [#allocation9], %s61
      %s64 = sshll.u32 [#allocation8], 4
      %s65 = int_to_ptr.vmem [resolvable:$true] %s64
      %67 = dma.hbm_to_vmem [thread:$0]  %s5, 16, %s65, [#allocation9]
    $region25: #{transformer_classifier_forward.3} parent=1 // pred_fallthru
      _
    // Predicated region
    $region26: #{transformer_classifier_forward.3} parent=1 // pred_check
      _
    $region27: #{transformer_classifier_forward.3} parent=1 // pred_check_branch
      %69 = sbr.rel (0) target = $region29
    $region28: #{transformer_classifier_forward.3} parent=1 // pred_region
      %s71 = ssub.s32 512, 512
      %72 = vsyncadd [#allocation9], %s71
      %s73 = sshll.u32 [#allocation10], 4
      %s74 = int_to_ptr.vmem [resolvable:$true] %s73
      %79 = dma.hbm_to_vmem [thread:$0]  %s6, 512, %s74, [#allocation9], 128, 128, 8
    $region29: #{transformer_classifier_forward.3} parent=1 // pred_fallthru
      _
    // Predicated region
    $region30: #{transformer_classifier_forward.3} parent=1 // pred_check
      _
    $region31: #{transformer_classifier_forward.3} parent=1 // pred_check_branch
      %81 = sbr.rel (0) target = $region33
    $region32: #{transformer_classifier_forward.3} parent=1 // pred_region
      %s83 = ssub.s32 16, 16
      %84 = vsyncadd [#allocation12], %s83
      %s86 = sshll.u32 [#allocation11], 4
      %s87 = int_to_ptr.vmem [resolvable:$true] %s86
      %89 = dma.hbm_to_vmem [thread:$0]  %s7, 16, %s87, [#allocation12]
    $region33: #{transformer_classifier_forward.3} parent=1 // pred_fallthru
      _
    // Predicated region
    $region34: #{transformer_classifier_forward.3} parent=1 // pred_check
      _
    $region35: #{transformer_classifier_forward.3} parent=1 // pred_check_branch
      %91 = sbr.rel (0) target = $region37
    $region36: #{transformer_classifier_forward.3} parent=1 // pred_region
      _
    $region37: #{transformer_classifier_forward.3} parent=1 // pred_fallthru
      _
    // Predicated region
    $region38: #{transformer_classifier_forward.3} parent=1 // pred_check
      _
    $region39: #{transformer_classifier_forward.3} parent=1 // pred_check_branch
      %93 = sbr.rel (0) target = $region41
    $region40: #{transformer_classifier_forward.3} parent=1 // pred_region
      %s95 = ssub.s32 16, 16
      %96 = vsyncadd [#allocation12], %s95
      %s98 = sshll.u32 [#allocation13], 4
      %s99 = int_to_ptr.vmem [resolvable:$true] %s98
      %101 = dma.hbm_to_vmem [thread:$0]  %s9, 16, %s99, [#allocation12]
    $region41: #{transformer_classifier_forward.3} parent=1 // pred_fallthru
      _
    // Predicated region
    $region42: #{transformer_classifier_forward.3} parent=1 // pred_check
      _
    $region43: #{transformer_classifier_forward.3} parent=1 // pred_check_branch
      %103 = sbr.rel (0) target = $region45
    $region44: #{transformer_classifier_forward.3} parent=1 // pred_region
      %s105 = ssub.s32 16, 16
      %106 = vsyncadd [#allocation15], %s105
      %s108 = sshll.u32 [#allocation14], 4
      %s109 = int_to_ptr.vmem [resolvable:$true] %s108
      %111 = dma.hbm_to_vmem [thread:$0]  %s10, 16, %s109, [#allocation15]
    $region45: #{transformer_classifier_forward.3} parent=1 // pred_fallthru
      _
    // Predicated region
    $region46: #{transformer_classifier_forward.3} parent=1 // pred_check
      _
    $region47: #{transformer_classifier_forward.3} parent=1 // pred_check_branch
      %113 = sbr.rel (0) target = $region49
    $region48: #{transformer_classifier_forward.3} parent=1 // pred_region
      %s115 = ssub.s32 16, 16
      %116 = vsyncadd [#allocation15], %s115
      %s118 = sshll.u32 [#allocation16], 4
      %s119 = int_to_ptr.vmem [resolvable:$true] %s118
      %121 = dma.hbm_to_vmem [thread:$0]  %s11, 16, %s119, [#allocation15]
    $region49: #{transformer_classifier_forward.3} parent=1 // pred_fallthru
      _
    // Predicated region
    $region50: #{transformer_classifier_forward.3} parent=1 // pred_check
      _
    $region51: #{transformer_classifier_forward.3} parent=1 // pred_check_branch
      %123 = sbr.rel (0) target = $region53
    $region52: #{transformer_classifier_forward.3} parent=1 // pred_region
      %124 = dma.done [#allocation4], 512
    $region53: #{transformer_classifier_forward.3} parent=1 // pred_fallthru
      _
    // Predicated region
    $region54: #{transformer_classifier_forward.3} parent=1 // pred_check
      _
    $region55: #{transformer_classifier_forward.3} parent=1 // pred_check_branch
      %126 = sbr.rel (0) target = $region57
    $region56: #{transformer_classifier_forward.3} parent=1 // pred_region
      %127 = dma.done [#allocation6], 16
    $region57: #{transformer_classifier_forward.3} parent=1 // pred_fallthru
      _
    // Predicated region
    $region58: #{transformer_classifier_forward.3} parent=1 // pred_check
      _
    $region59: #{transformer_classifier_forward.3} parent=1 // pred_check_branch
      %129 = sbr.rel (0) target = $region61
    $region60: #{transformer_classifier_forward.3} parent=1 // pred_region
      %130 = dma.done [#allocation6], 16
    $region61: #{transformer_classifier_forward.3} parent=1 // pred_fallthru
      _
    // Predicated region
    $region62: #{transformer_classifier_forward.3} parent=1 // pred_check
      _
    $region63: #{transformer_classifier_forward.3} parent=1 // pred_check_branch
      %132 = sbr.rel (0) target = $region65
    $region64: #{transformer_classifier_forward.3} parent=1 // pred_region
      %133 = dma.done [#allocation9], 16
    $region65: #{transformer_classifier_forward.3} parent=1 // pred_fallthru
      _
    // Predicated region
    $region66: #{transformer_classifier_forward.3} parent=1 // pred_check
      _
    $region67: #{transformer_classifier_forward.3} parent=1 // pred_check_branch
      %135 = sbr.rel (0) target = $region69
    $region68: #{transformer_classifier_forward.3} parent=1 // pred_region
      %136 = dma.done [#allocation9], 512
    $region69: #{transformer_classifier_forward.3} parent=1 // pred_fallthru
      _
    // Predicated region
    $region70: #{transformer_classifier_forward.3} parent=1 // pred_check
      _
    $region71: #{transformer_classifier_forward.3} parent=1 // pred_check_branch
      %138 = sbr.rel (0) target = $region73
    $region72: #{transformer_classifier_forward.3} parent=1 // pred_region
      %139 = dma.done [#allocation12], 16
    $region73: #{transformer_classifier_forward.3} parent=1 // pred_fallthru
      _
    // Predicated region
    $region74: #{transformer_classifier_forward.3} parent=1 // pred_check
      _
    $region75: #{transformer_classifier_forward.3} parent=1 // pred_check_branch
      %141 = sbr.rel (0) target = $region77
    $region76: #{transformer_classifier_forward.3} parent=1 // pred_region
      %142 = dma.done [#allocation12], 16
    $region77: #{transformer_classifier_forward.3} parent=1 // pred_fallthru
      _
    // Predicated region
    $region78: #{transformer_classifier_forward.3} parent=1 // pred_check
      _
    $region79: #{transformer_classifier_forward.3} parent=1 // pred_check_branch
      %144 = sbr.rel (0) target = $region81
    $region80: #{transformer_classifier_forward.3} parent=1 // pred_region
      %145 = dma.done [#allocation15], 16
    $region81: #{transformer_classifier_forward.3} parent=1 // pred_fallthru
      _
    // Predicated region
    $region82: #{transformer_classifier_forward.3} parent=1 // pred_check
      _
    $region83: #{transformer_classifier_forward.3} parent=1 // pred_check_branch
      %147 = sbr.rel (0) target = $region85
    $region84: #{transformer_classifier_forward.3} parent=1 // pred_region
      %148 = dma.done [#allocation15], 16
    $region85: #{transformer_classifier_forward.3} parent=1 // pred_fallthru
      _
    %v149 = vld [vmem:[%s0] sm:$0xff]
    %v150 = vld [vmem:[%s0 + $0x8] sm:$0xff]
    %v151 = vld [vmem:[%s1] sm:$0xff]
    %v152 = vld [vmem:[%s1 + $0x8] sm:$0xff]
    %v153 = vld [vmem:[%s1 + $0x10] sm:$0xff]
    %v154 = vld [vmem:[%s1 + $0x18] sm:$0xff]
    %vm155 = vcmask 261120
    %v157 = vsel %vm155, %v149, 0
    %v160 = vsel %vm155, %v150, 0
    %162 = vmatprep.subr.mxu0 0.0
    %163 = vmatpush1.msra.mxu0 0.0
    %164 = vmatprep.subr.mxu0 0.0
    %165 = vmatpush1.msra.mxu0 0.0
    %166 = vmatprep.subr.mxu0 0.0
    %167 = vmatpush1.msra.mxu0 0.0
    %168 = vmatprep.subr.mxu0 0.0
    %169 = vmatpush1.msra.mxu0 0.0
    %170 = vmatprep.subr.mxu0 0.0
    %171 = vmatpush1.msra.mxu0 0.0
    %172 = vmatprep.subr.mxu0 0.0
    %173 = vmatpush1.msra.mxu0 0.0
    %174 = vmatprep.subr.mxu0 0.0
    %175 = vmatpush1.msra.mxu0 0.0
    %176 = vmatprep.subr.mxu0 0.0
    %177 = vmatpush1.msra.mxu0 0.0
    %178 = vmatprep.subr.mxu0 0.0
    %179 = vmatpush1.msra.mxu0 0.0
    %180 = vmatprep.subr.mxu0 0.0
    %181 = vmatpush1.msra.mxu0 0.0
    %182 = vmatprep.subr.mxu0 0.0
    %183 = vmatpush1.msra.mxu0 0.0
    %184 = vmatprep.subr.mxu0 0.0
    %185 = vmatpush1.msra.mxu0 0.0
    %186 = vmatprep.subr.mxu0 0.0
    %187 = vmatpush1.msra.mxu0 %v154
    %188 = vmatprep.subr.mxu0 0.0
    %189 = vmatpush1.msra.mxu0 %v153
    %190 = vmatprep.subr.mxu0 0.0
    %191 = vmatpush1.msra.mxu0 %v152
    %192 = vmatprep.subr.mxu0 0.0
    %193 = vmatpush1.msra.mxu0 %v151
    %194 = vmatprep.subr.mxu0 0.0
    %195 = vmatpush2.msra.mxu0 0.0
    %196 = vmatprep.subr.mxu0 0.0
    %197 = vmatpush2.msra.mxu0 0.0
    %198 = vmatprep.subr.mxu0 0.0
    %199 = vmatpush2.msra.mxu0 0.0
    %200 = vmatprep.subr.mxu0 0.0
    %201 = vmatpush2.msra.mxu0 0.0
    %202 = vmatprep.subr.mxu0 0.0
    %203 = vmatpush2.msra.mxu0 0.0
    %204 = vmatprep.subr.mxu0 0.0
    %205 = vmatpush2.msra.mxu0 0.0
    %206 = vmatprep.subr.mxu0 0.0
    %207 = vmatpush2.msra.mxu0 0.0
    %208 = vmatprep.subr.mxu0 0.0
    %209 = vmatpush2.msra.mxu0 0.0
    %210 = vmatprep.subr.mxu0 0.0
    %211 = vmatpush2.msra.mxu0 0.0
    %212 = vmatprep.subr.mxu0 0.0
    %213 = vmatpush2.msra.mxu0 0.0
    %214 = vmatprep.subr.mxu0 0.0
    %215 = vmatpush2.msra.mxu0 0.0
    %216 = vmatprep.subr.mxu0 0.0
    %217 = vmatpush2.msra.mxu0 0.0
    %218 = vmatprep.subr.mxu0 0.0
    %219 = vmatpush2.msra.mxu0 0.0
    %220 = vmatprep.subr.mxu0 0.0
    %221 = vmatpush2.msra.mxu0 0.0
    %222 = vmatprep.subr.mxu0 0.0
    %223 = vmatpush2.msra.mxu0 0.0
    %224 = vmatprep.subr.mxu0 0.0
    %225 = vmatpush2.msra.mxu0 0.0
    %226 = vmatprep.mubr.f32.mxu0 0.0
    %227 = vmatmul.mubr.f32.gmra.mxu0 %v157
    %v228 = vpop.f32.mrf.mxu0
    %v229 = vadd.f32 0.0, %v228
    %v230 = vpop.f32.mrf.mxu0
    %231 = vmatprep.mubr.f32.mxu0 0.0
    %232 = vmatmul.mubr.f32.gmra.mxu0 %v160
    %v233 = vpop.f32.mrf.mxu0
    %v234 = vadd.f32 0.0, %v233
    %v235 = vpop.f32.mrf.mxu0
    %236 = vdwg.mxu0
    %v237 = vmul.f32 %v229, 0.35355338
    %v238 = vmul.f32 %v234, 0.35355338
    %240 = vrot.lane.b32.xlu0 %v229, 96
    %v241 = vpop.permute.xlu0 %240
    %vm242 = vcmask 64512
    %v244 = vsel %vm242, %v237, 0
    %v246 = vsel %vm242, %v241, 0
    %248 = vmatprep.subr.mxu0 0.0
    %249 = vmatpush1.xpose.msra.mxu0 0.0
    %250 = vmatprep.subr.mxu0 0.0
    %251 = vmatpush1.xpose.msra.mxu0 0.0
    %252 = vmatprep.subr.mxu0 0.0
    %253 = vmatpush1.xpose.msra.mxu0 0.0
    %254 = vmatprep.subr.mxu0 0.0
    %255 = vmatpush1.xpose.msra.mxu0 0.0
    %256 = vmatprep.subr.mxu0 0.0
    %257 = vmatpush1.xpose.msra.mxu0 0.0
    %258 = vmatprep.subr.mxu0 0.0
    %259 = vmatpush1.xpose.msra.mxu0 0.0
    %260 = vmatprep.subr.mxu0 0.0
    %261 = vmatpush1.xpose.msra.mxu0 0.0
    %262 = vmatprep.subr.mxu0 0.0
    %263 = vmatpush1.xpose.msra.mxu0 0.0
    %264 = vmatprep.subr.mxu0 0.0
    %265 = vmatpush1.xpose.msra.mxu0 0.0
    %266 = vmatprep.subr.mxu0 0.0
    %267 = vmatpush1.xpose.msra.mxu0 0.0
    %268 = vmatprep.subr.mxu0 0.0
    %269 = vmatpush1.xpose.msra.mxu0 0.0
    %270 = vmatprep.subr.mxu0 0.0
    %271 = vmatpush1.xpose.msra.mxu0 0.0
    %272 = vmatprep.subr.mxu0 0.0
    %273 = vmatpush1.xpose.msra.mxu0 0.0
    %274 = vmatprep.subr.mxu0 0.0
    %275 = vmatpush1.xpose.msra.mxu0 0.0
    %276 = vmatprep.subr.mxu0 0.0
    %277 = vmatpush1.xpose.msra.mxu0 0.0
    %278 = vmatprep.subr.mxu0 0.0
    %279 = vmatpush1.xpose.msra.mxu0 %v246
    %280 = vmatprep.subr.mxu0 0.0
    %281 = vmatpush2.xpose.msra.mxu0 0.0
    %282 = vmatprep.subr.mxu0 0.0
    %283 = vmatpush2.xpose.msra.mxu0 0.0
    %284 = vmatprep.subr.mxu0 0.0
    %285 = vmatpush2.xpose.msra.mxu0 0.0
    %286 = vmatprep.subr.mxu0 0.0
    %287 = vmatpush2.xpose.msra.mxu0 0.0
    %288 = vmatprep.subr.mxu0 0.0
    %289 = vmatpush2.xpose.msra.mxu0 0.0
    %290 = vmatprep.subr.mxu0 0.0
    %291 = vmatpush2.xpose.msra.mxu0 0.0
    %292 = vmatprep.subr.mxu0 0.0
    %293 = vmatpush2.xpose.msra.mxu0 0.0
    %294 = vmatprep.subr.mxu0 0.0
    %295 = vmatpush2.xpose.msra.mxu0 0.0
    %296 = vmatprep.subr.mxu0 0.0
    %297 = vmatpush2.xpose.msra.mxu0 0.0
    %298 = vmatprep.subr.mxu0 0.0
    %299 = vmatpush2.xpose.msra.mxu0 0.0
    %300 = vmatprep.subr.mxu0 0.0
    %301 = vmatpush2.xpose.msra.mxu0 0.0
    %302 = vmatprep.subr.mxu0 0.0
    %303 = vmatpush2.xpose.msra.mxu0 0.0
    %304 = vmatprep.subr.mxu0 0.0
    %305 = vmatpush2.xpose.msra.mxu0 0.0
    %306 = vmatprep.subr.mxu0 0.0
    %307 = vmatpush2.xpose.msra.mxu0 0.0
    %308 = vmatprep.subr.mxu0 0.0
    %309 = vmatpush2.xpose.msra.mxu0 0.0
    %310 = vmatprep.subr.mxu0 0.0
    %311 = vmatpush2.xpose.msra.mxu0 0.0
    %312 = vmatprep.mubr.f32.mxu0 0.0
    %313 = vmatmul.mubr.f32.gmra.mxu0 %v244
    %v314 = vpop.f32.mrf.mxu0
    %v315 = vadd.f32 0.0, %v314
    %v316 = vpop.f32.mrf.mxu0
    %317 = vdwg.mxu0
    %319 = vrot.lane.b32.xlu0 %v234, 96
    %v320 = vpop.permute.xlu0 %319
    %v322 = vsel %vm242, %v238, 0
    %v324 = vsel %vm242, %v320, 0
    %326 = vmatprep.subr.mxu0 0.0
    %327 = vmatpush1.xpose.msra.mxu0 0.0
    %328 = vmatprep.subr.mxu0 0.0
    %329 = vmatpush1.xpose.msra.mxu0 0.0
    %330 = vmatprep.subr.mxu0 0.0
    %331 = vmatpush1.xpose.msra.mxu0 0.0
    %332 = vmatprep.subr.mxu0 0.0
    %333 = vmatpush1.xpose.msra.mxu0 0.0
    %334 = vmatprep.subr.mxu0 0.0
    %335 = vmatpush1.xpose.msra.mxu0 0.0
    %336 = vmatprep.subr.mxu0 0.0
    %337 = vmatpush1.xpose.msra.mxu0 0.0
    %338 = vmatprep.subr.mxu0 0.0
    %339 = vmatpush1.xpose.msra.mxu0 0.0
    %340 = vmatprep.subr.mxu0 0.0
    %341 = vmatpush1.xpose.msra.mxu0 0.0
    %342 = vmatprep.subr.mxu0 0.0
    %343 = vmatpush1.xpose.msra.mxu0 0.0
    %344 = vmatprep.subr.mxu0 0.0
    %345 = vmatpush1.xpose.msra.mxu0 0.0
    %346 = vmatprep.subr.mxu0 0.0
    %347 = vmatpush1.xpose.msra.mxu0 0.0
    %348 = vmatprep.subr.mxu0 0.0
    %349 = vmatpush1.xpose.msra.mxu0 0.0
    %350 = vmatprep.subr.mxu0 0.0
    %351 = vmatpush1.xpose.msra.mxu0 0.0
    %352 = vmatprep.subr.mxu0 0.0
    %353 = vmatpush1.xpose.msra.mxu0 0.0
    %354 = vmatprep.subr.mxu0 0.0
    %355 = vmatpush1.xpose.msra.mxu0 0.0
    %356 = vmatprep.subr.mxu0 0.0
    %357 = vmatpush1.xpose.msra.mxu0 %v324
    %358 = vmatprep.subr.mxu0 0.0
    %359 = vmatpush2.xpose.msra.mxu0 0.0
    %360 = vmatprep.subr.mxu0 0.0
    %361 = vmatpush2.xpose.msra.mxu0 0.0
    %362 = vmatprep.subr.mxu0 0.0
    %363 = vmatpush2.xpose.msra.mxu0 0.0
    %364 = vmatprep.subr.mxu0 0.0
    %365 = vmatpush2.xpose.msra.mxu0 0.0
    %366 = vmatprep.subr.mxu0 0.0
    %367 = vmatpush2.xpose.msra.mxu0 0.0
    %368 = vmatprep.subr.mxu0 0.0
    %369 = vmatpush2.xpose.msra.mxu0 0.0
    %370 = vmatprep.subr.mxu0 0.0
    %371 = vmatpush2.xpose.msra.mxu0 0.0
    %372 = vmatprep.subr.mxu0 0.0
    %373 = vmatpush2.xpose.msra.mxu0 0.0
    %374 = vmatprep.subr.mxu0 0.0
    %375 = vmatpush2.xpose.msra.mxu0 0.0
    %376 = vmatprep.subr.mxu0 0.0
    %377 = vmatpush2.xpose.msra.mxu0 0.0
    %378 = vmatprep.subr.mxu0 0.0
    %379 = vmatpush2.xpose.msra.mxu0 0.0
    %380 = vmatprep.subr.mxu0 0.0
    %381 = vmatpush2.xpose.msra.mxu0 0.0
    %382 = vmatprep.subr.mxu0 0.0
    %383 = vmatpush2.xpose.msra.mxu0 0.0
    %384 = vmatprep.subr.mxu0 0.0
    %385 = vmatpush2.xpose.msra.mxu0 0.0
    %386 = vmatprep.subr.mxu0 0.0
    %387 = vmatpush2.xpose.msra.mxu0 0.0
    %388 = vmatprep.subr.mxu0 0.0
    %389 = vmatpush2.xpose.msra.mxu0 0.0
    %390 = vmatprep.mubr.f32.mxu0 0.0
    %391 = vmatmul.mubr.f32.gmra.mxu0 %v322
    %v392 = vpop.f32.mrf.mxu0
    %v393 = vadd.f32 0.0, %v392
    %v394 = vpop.f32.mrf.mxu0
    %395 = vdwg.mxu0
    %v396 = vsel %vm242, %v315, -inf
    %397 = vmax.xlane.f32.xlu0 %v396
    %v398 = vpop.xlane.xlu0 %397
    %v399 = vsel %vm242, %v393, -inf
    %400 = vmax.xlane.f32.xlu0 %v399
    %v401 = vpop.xlane.xlu0 %400
    %v402 = vsub.f32 %v315, %v398
    %v403 = vsub.f32 %v393, %v401
    %v404 = vmul.f32 %v402, 1.442695
    %v405 = vpow.pop %v404
    %v406 = vmul.f32 %v403, 1.442695
    %v407 = vpow.pop %v406
    %v408 = vsel %vm242, %v405, 0.0
    %409 = vadd.xlane.f32.xlu0 %v408
    %v410 = vpop.xlane.xlu0 %409
    %v411 = vsel %vm242, %v407, 0.0
    %412 = vadd.xlane.f32.xlu0 %v411
    %v413 = vpop.xlane.xlu0 %412
    %v414 = vrcp.pop %v410
    %v415 = vrcp.pop %v413
    %v416 = vmul.f32 %v405, %v414
    %v417 = vmul.f32 %v407, %v415
    %418 = vrot.lane.b32.xlu0 %v229, 64
    %v419 = vpop.permute.xlu0 %418
    %v422 = vsel %vm242, %v416, 0
    %424 = vmatprep.subr.mxu0 0.0
    %425 = vmatpush1.msra.mxu0 0.0
    %426 = vmatprep.subr.mxu0 0.0
    %427 = vmatpush1.msra.mxu0 0.0
    %428 = vmatprep.subr.mxu0 0.0
    %429 = vmatpush1.msra.mxu0 0.0
    %430 = vmatprep.subr.mxu0 0.0
    %431 = vmatpush1.msra.mxu0 0.0
    %432 = vmatprep.subr.mxu0 0.0
    %433 = vmatpush1.msra.mxu0 0.0
    %434 = vmatprep.subr.mxu0 0.0
    %435 = vmatpush1.msra.mxu0 0.0
    %436 = vmatprep.subr.mxu0 0.0
    %437 = vmatpush1.msra.mxu0 0.0
    %438 = vmatprep.subr.mxu0 0.0
    %439 = vmatpush1.msra.mxu0 0.0
    %440 = vmatprep.subr.mxu0 0.0
    %441 = vmatpush1.msra.mxu0 0.0
    %442 = vmatprep.subr.mxu0 0.0
    %443 = vmatpush1.msra.mxu0 0.0
    %444 = vmatprep.subr.mxu0 0.0
    %445 = vmatpush1.msra.mxu0 0.0
    %446 = vmatprep.subr.mxu0 0.0
    %447 = vmatpush1.msra.mxu0 0.0
    %448 = vmatprep.subr.mxu0 0.0
    %449 = vmatpush1.msra.mxu0 0.0
    %450 = vmatprep.subr.mxu0 0.0
    %451 = vmatpush1.msra.mxu0 0.0
    %452 = vmatprep.subr.mxu0 0.0
    %453 = vmatpush1.msra.mxu0 0.0
    %454 = vmatprep.subr.mxu0 0.0
    %455 = vmatpush1.msra.mxu0 %v419
    %456 = vmatprep.subr.mxu0 0.0
    %457 = vmatpush2.msra.mxu0 0.0
    %458 = vmatprep.subr.mxu0 0.0
    %459 = vmatpush2.msra.mxu0 0.0
    %460 = vmatprep.subr.mxu0 0.0
    %461 = vmatpush2.msra.mxu0 0.0
    %462 = vmatprep.subr.mxu0 0.0
    %463 = vmatpush2.msra.mxu0 0.0
    %464 = vmatprep.subr.mxu0 0.0
    %465 = vmatpush2.msra.mxu0 0.0
    %466 = vmatprep.subr.mxu0 0.0
    %467 = vmatpush2.msra.mxu0 0.0
    %468 = vmatprep.subr.mxu0 0.0
    %469 = vmatpush2.msra.mxu0 0.0
    %470 = vmatprep.subr.mxu0 0.0
    %471 = vmatpush2.msra.mxu0 0.0
    %472 = vmatprep.subr.mxu0 0.0
    %473 = vmatpush2.msra.mxu0 0.0
    %474 = vmatprep.subr.mxu0 0.0
    %475 = vmatpush2.msra.mxu0 0.0
    %476 = vmatprep.subr.mxu0 0.0
    %477 = vmatpush2.msra.mxu0 0.0
    %478 = vmatprep.subr.mxu0 0.0
    %479 = vmatpush2.msra.mxu0 0.0
    %480 = vmatprep.subr.mxu0 0.0
    %481 = vmatpush2.msra.mxu0 0.0
    %482 = vmatprep.subr.mxu0 0.0
    %483 = vmatpush2.msra.mxu0 0.0
    %484 = vmatprep.subr.mxu0 0.0
    %485 = vmatpush2.msra.mxu0 0.0
    %486 = vmatprep.subr.mxu0 0.0
    %487 = vmatpush2.msra.mxu0 0.0
    %488 = vmatprep.mubr.f32.mxu0 0.0
    %489 = vmatmul.mubr.f32.gmra.mxu0 %v422
    %v490 = vpop.f32.mrf.mxu0
    %v491 = vadd.f32 0.0, %v490
    %v492 = vpop.f32.mrf.mxu0
    %493 = vdwg.mxu0
    %494 = vrot.lane.b32.xlu0 %v234, 64
    %v495 = vpop.permute.xlu0 %494
    %v498 = vsel %vm242, %v417, 0
    %500 = vmatprep.subr.mxu0 0.0
    %501 = vmatpush1.msra.mxu0 0.0
    %502 = vmatprep.subr.mxu0 0.0
    %503 = vmatpush1.msra.mxu0 0.0
    %504 = vmatprep.subr.mxu0 0.0
    %505 = vmatpush1.msra.mxu0 0.0
    %506 = vmatprep.subr.mxu0 0.0
    %507 = vmatpush1.msra.mxu0 0.0
    %508 = vmatprep.subr.mxu0 0.0
    %509 = vmatpush1.msra.mxu0 0.0
    %510 = vmatprep.subr.mxu0 0.0
    %511 = vmatpush1.msra.mxu0 0.0
    %512 = vmatprep.subr.mxu0 0.0
    %513 = vmatpush1.msra.mxu0 0.0
    %514 = vmatprep.subr.mxu0 0.0
    %515 = vmatpush1.msra.mxu0 0.0
    %516 = vmatprep.subr.mxu0 0.0
    %517 = vmatpush1.msra.mxu0 0.0
    %518 = vmatprep.subr.mxu0 0.0
    %519 = vmatpush1.msra.mxu0 0.0
    %520 = vmatprep.subr.mxu0 0.0
    %521 = vmatpush1.msra.mxu0 0.0
    %522 = vmatprep.subr.mxu0 0.0
    %523 = vmatpush1.msra.mxu0 0.0
    %524 = vmatprep.subr.mxu0 0.0
    %525 = vmatpush1.msra.mxu0 0.0
    %526 = vmatprep.subr.mxu0 0.0
    %527 = vmatpush1.msra.mxu0 0.0
    %528 = vmatprep.subr.mxu0 0.0
    %529 = vmatpush1.msra.mxu0 0.0
    %530 = vmatprep.subr.mxu0 0.0
    %531 = vmatpush1.msra.mxu0 %v495
    %532 = vmatprep.subr.mxu0 0.0
    %533 = vmatpush2.msra.mxu0 0.0
    %534 = vmatprep.subr.mxu0 0.0
    %535 = vmatpush2.msra.mxu0 0.0
    %536 = vmatprep.subr.mxu0 0.0
    %537 = vmatpush2.msra.mxu0 0.0
    %538 = vmatprep.subr.mxu0 0.0
    %539 = vmatpush2.msra.mxu0 0.0
    %540 = vmatprep.subr.mxu0 0.0
    %541 = vmatpush2.msra.mxu0 0.0
    %542 = vmatprep.subr.mxu0 0.0
    %543 = vmatpush2.msra.mxu0 0.0
    %544 = vmatprep.subr.mxu0 0.0
    %545 = vmatpush2.msra.mxu0 0.0
    %546 = vmatprep.subr.mxu0 0.0
    %547 = vmatpush2.msra.mxu0 0.0
    %548 = vmatprep.subr.mxu0 0.0
    %549 = vmatpush2.msra.mxu0 0.0
    %550 = vmatprep.subr.mxu0 0.0
    %551 = vmatpush2.msra.mxu0 0.0
    %552 = vmatprep.subr.mxu0 0.0
    %553 = vmatpush2.msra.mxu0 0.0
    %554 = vmatprep.subr.mxu0 0.0
    %555 = vmatpush2.msra.mxu0 0.0
    %556 = vmatprep.subr.mxu0 0.0
    %557 = vmatpush2.msra.mxu0 0.0
    %558 = vmatprep.subr.mxu0 0.0
    %559 = vmatpush2.msra.mxu0 0.0
    %560 = vmatprep.subr.mxu0 0.0
    %561 = vmatpush2.msra.mxu0 0.0
    %562 = vmatprep.subr.mxu0 0.0
    %563 = vmatpush2.msra.mxu0 0.0
    %564 = vmatprep.mubr.f32.mxu0 0.0
    %565 = vmatmul.mubr.f32.gmra.mxu0 %v498
    %v566 = vpop.f32.mrf.mxu0
    %v567 = vadd.f32 0.0, %v566
    %v568 = vpop.f32.mrf.mxu0
    %569 = vdwg.mxu0
    %570 = vst.msk [vmem:[#allocation2] sm:$0xff] %vm242, %v491
    %571 = vst.msk [vmem:[#allocation2 + $0x8] sm:$0xff] %vm242, %v567
    %572 = vrot.lane.b32.xlu0 %v237, 120
    %v573 = vpop.permute.xlu0 %572
    %574 = vrot.lane.b32.xlu0 %v229, 88
    %v575 = vpop.permute.xlu0 %574
    %v576 = vsel %vm242, %v573, 0
    %v578 = vsel %vm242, %v575, 0
    %580 = vmatprep.subr.mxu0 0.0
    %581 = vmatpush1.xpose.msra.mxu0 0.0
    %582 = vmatprep.subr.mxu0 0.0
    %583 = vmatpush1.xpose.msra.mxu0 0.0
    %584 = vmatprep.subr.mxu0 0.0
    %585 = vmatpush1.xpose.msra.mxu0 0.0
    %586 = vmatprep.subr.mxu0 0.0
    %587 = vmatpush1.xpose.msra.mxu0 0.0
    %588 = vmatprep.subr.mxu0 0.0
    %589 = vmatpush1.xpose.msra.mxu0 0.0
    %590 = vmatprep.subr.mxu0 0.0
    %591 = vmatpush1.xpose.msra.mxu0 0.0
    %592 = vmatprep.subr.mxu0 0.0
    %593 = vmatpush1.xpose.msra.mxu0 0.0
    %594 = vmatprep.subr.mxu0 0.0
    %595 = vmatpush1.xpose.msra.mxu0 0.0
    %596 = vmatprep.subr.mxu0 0.0
    %597 = vmatpush1.xpose.msra.mxu0 0.0
    %598 = vmatprep.subr.mxu0 0.0
    %599 = vmatpush1.xpose.msra.mxu0 0.0
    %600 = vmatprep.subr.mxu0 0.0
    %601 = vmatpush1.xpose.msra.mxu0 0.0
    %602 = vmatprep.subr.mxu0 0.0
    %603 = vmatpush1.xpose.msra.mxu0 0.0
    %604 = vmatprep.subr.mxu0 0.0
    %605 = vmatpush1.xpose.msra.mxu0 0.0
    %606 = vmatprep.subr.mxu0 0.0
    %607 = vmatpush1.xpose.msra.mxu0 0.0
    %608 = vmatprep.subr.mxu0 0.0
    %609 = vmatpush1.xpose.msra.mxu0 0.0
    %610 = vmatprep.subr.mxu0 0.0
    %611 = vmatpush1.xpose.msra.mxu0 %v578
    %612 = vmatprep.subr.mxu0 0.0
    %613 = vmatpush2.xpose.msra.mxu0 0.0
    %614 = vmatprep.subr.mxu0 0.0
    %615 = vmatpush2.xpose.msra.mxu0 0.0
    %616 = vmatprep.subr.mxu0 0.0
    %617 = vmatpush2.xpose.msra.mxu0 0.0
    %618 = vmatprep.subr.mxu0 0.0
    %619 = vmatpush2.xpose.msra.mxu0 0.0
    %620 = vmatprep.subr.mxu0 0.0
    %621 = vmatpush2.xpose.msra.mxu0 0.0
    %622 = vmatprep.subr.mxu0 0.0
    %623 = vmatpush2.xpose.msra.mxu0 0.0
    %624 = vmatprep.subr.mxu0 0.0
    %625 = vmatpush2.xpose.msra.mxu0 0.0
    %626 = vmatprep.subr.mxu0 0.0
    %627 = vmatpush2.xpose.msra.mxu0 0.0
    %628 = vmatprep.subr.mxu0 0.0
    %629 = vmatpush2.xpose.msra.mxu0 0.0
    %630 = vmatprep.subr.mxu0 0.0
    %631 = vmatpush2.xpose.msra.mxu0 0.0
    %632 = vmatprep.subr.mxu0 0.0
    %633 = vmatpush2.xpose.msra.mxu0 0.0
    %634 = vmatprep.subr.mxu0 0.0
    %635 = vmatpush2.xpose.msra.mxu0 0.0
    %636 = vmatprep.subr.mxu0 0.0
    %637 = vmatpush2.xpose.msra.mxu0 0.0
    %638 = vmatprep.subr.mxu0 0.0
    %639 = vmatpush2.xpose.msra.mxu0 0.0
    %640 = vmatprep.subr.mxu0 0.0
    %641 = vmatpush2.xpose.msra.mxu0 0.0
    %642 = vmatprep.subr.mxu0 0.0
    %643 = vmatpush2.xpose.msra.mxu0 0.0
    %644 = vmatprep.mubr.f32.mxu0 0.0
    %645 = vmatmul.mubr.f32.gmra.mxu0 %v576
    %v646 = vpop.f32.mrf.mxu0
    %v647 = vadd.f32 0.0, %v646
    %v648 = vpop.f32.mrf.mxu0
    %649 = vdwg.mxu0
    %650 = vrot.lane.b32.xlu0 %v238, 120
    %v651 = vpop.permute.xlu0 %650
    %652 = vrot.lane.b32.xlu0 %v234, 88
    %v653 = vpop.permute.xlu0 %652
    %v654 = vsel %vm242, %v651, 0
    %v656 = vsel %vm242, %v653, 0
    %658 = vmatprep.subr.mxu0 0.0
    %659 = vmatpush1.xpose.msra.mxu0 0.0
    %660 = vmatprep.subr.mxu0 0.0
    %661 = vmatpush1.xpose.msra.mxu0 0.0
    %662 = vmatprep.subr.mxu0 0.0
    %663 = vmatpush1.xpose.msra.mxu0 0.0
    %664 = vmatprep.subr.mxu0 0.0
    %665 = vmatpush1.xpose.msra.mxu0 0.0
    %666 = vmatprep.subr.mxu0 0.0
    %667 = vmatpush1.xpose.msra.mxu0 0.0
    %668 = vmatprep.subr.mxu0 0.0
    %669 = vmatpush1.xpose.msra.mxu0 0.0
    %670 = vmatprep.subr.mxu0 0.0
    %671 = vmatpush1.xpose.msra.mxu0 0.0
    %672 = vmatprep.subr.mxu0 0.0
    %673 = vmatpush1.xpose.msra.mxu0 0.0
    %674 = vmatprep.subr.mxu0 0.0
    %675 = vmatpush1.xpose.msra.mxu0 0.0
    %676 = vmatprep.subr.mxu0 0.0
    %677 = vmatpush1.xpose.msra.mxu0 0.0
    %678 = vmatprep.subr.mxu0 0.0
    %679 = vmatpush1.xpose.msra.mxu0 0.0
    %680 = vmatprep.subr.mxu0 0.0
    %681 = vmatpush1.xpose.msra.mxu0 0.0
    %682 = vmatprep.subr.mxu0 0.0
    %683 = vmatpush1.xpose.msra.mxu0 0.0
    %684 = vmatprep.subr.mxu0 0.0
    %685 = vmatpush1.xpose.msra.mxu0 0.0
    %686 = vmatprep.subr.mxu0 0.0
    %687 = vmatpush1.xpose.msra.mxu0 0.0
    %688 = vmatprep.subr.mxu0 0.0
    %689 = vmatpush1.xpose.msra.mxu0 %v656
    %690 = vmatprep.subr.mxu0 0.0
    %691 = vmatpush2.xpose.msra.mxu0 0.0
    %692 = vmatprep.subr.mxu0 0.0
    %693 = vmatpush2.xpose.msra.mxu0 0.0
    %694 = vmatprep.subr.mxu0 0.0
    %695 = vmatpush2.xpose.msra.mxu0 0.0
    %696 = vmatprep.subr.mxu0 0.0
    %697 = vmatpush2.xpose.msra.mxu0 0.0
    %698 = vmatprep.subr.mxu0 0.0
    %699 = vmatpush2.xpose.msra.mxu0 0.0
    %700 = vmatprep.subr.mxu0 0.0
    %701 = vmatpush2.xpose.msra.mxu0 0.0
    %702 = vmatprep.subr.mxu0 0.0
    %703 = vmatpush2.xpose.msra.mxu0 0.0
    %704 = vmatprep.subr.mxu0 0.0
    %705 = vmatpush2.xpose.msra.mxu0 0.0
    %706 = vmatprep.subr.mxu0 0.0
    %707 = vmatpush2.xpose.msra.mxu0 0.0
    %708 = vmatprep.subr.mxu0 0.0
    %709 = vmatpush2.xpose.msra.mxu0 0.0
    %710 = vmatprep.subr.mxu0 0.0
    %711 = vmatpush2.xpose.msra.mxu0 0.0
    %712 = vmatprep.subr.mxu0 0.0
    %713 = vmatpush2.xpose.msra.mxu0 0.0
    %714 = vmatprep.subr.mxu0 0.0
    %715 = vmatpush2.xpose.msra.mxu0 0.0
    %716 = vmatprep.subr.mxu0 0.0
    %717 = vmatpush2.xpose.msra.mxu0 0.0
    %718 = vmatprep.subr.mxu0 0.0
    %719 = vmatpush2.xpose.msra.mxu0 0.0
    %720 = vmatprep.subr.mxu0 0.0
    %721 = vmatpush2.xpose.msra.mxu0 0.0
    %722 = vmatprep.mubr.f32.mxu0 0.0
    %723 = vmatmul.mubr.f32.gmra.mxu0 %v654
    %v724 = vpop.f32.mrf.mxu0
    %v725 = vadd.f32 0.0, %v724
    %v726 = vpop.f32.mrf.mxu0
    %727 = vdwg.mxu0
    %v728 = vsel %vm242, %v647, -inf
    %729 = vmax.xlane.f32.xlu0 %v728
    %v730 = vpop.xlane.xlu0 %729
    %v731 = vsel %vm242, %v725, -inf
    %732 = vmax.xlane.f32.xlu0 %v731
    %v733 = vpop.xlane.xlu0 %732
    %v734 = vsub.f32 %v647, %v730
    %v735 = vsub.f32 %v725, %v733
    %v736 = vmul.f32 %v734, 1.442695
    %v737 = vpow.pop %v736
    %v738 = vmul.f32 %v735, 1.442695
    %v739 = vpow.pop %v738
    %v740 = vsel %vm242, %v737, 0.0
    %741 = vadd.xlane.f32.xlu0 %v740
    %v742 = vpop.xlane.xlu0 %741
    %v743 = vsel %vm242, %v739, 0.0
    %744 = vadd.xlane.f32.xlu0 %v743
    %v745 = vpop.xlane.xlu0 %744
    %v746 = vrcp.pop %v742
    %v747 = vrcp.pop %v745
    %v748 = vmul.f32 %v737, %v746
    %v749 = vmul.f32 %v739, %v747
    %750 = vrot.lane.b32.xlu0 %v229, 56
    %v751 = vpop.permute.xlu0 %750
    %v754 = vsel %vm242, %v748, 0
    %756 = vmatprep.subr.mxu0 0.0
    %757 = vmatpush1.msra.mxu0 0.0
    %758 = vmatprep.subr.mxu0 0.0
    %759 = vmatpush1.msra.mxu0 0.0
    %760 = vmatprep.subr.mxu0 0.0
    %761 = vmatpush1.msra.mxu0 0.0
    %762 = vmatprep.subr.mxu0 0.0
    %763 = vmatpush1.msra.mxu0 0.0
    %764 = vmatprep.subr.mxu0 0.0
    %765 = vmatpush1.msra.mxu0 0.0
    %766 = vmatprep.subr.mxu0 0.0
    %767 = vmatpush1.msra.mxu0 0.0
    %768 = vmatprep.subr.mxu0 0.0
    %769 = vmatpush1.msra.mxu0 0.0
    %770 = vmatprep.subr.mxu0 0.0
    %771 = vmatpush1.msra.mxu0 0.0
    %772 = vmatprep.subr.mxu0 0.0
    %773 = vmatpush1.msra.mxu0 0.0
    %774 = vmatprep.subr.mxu0 0.0
    %775 = vmatpush1.msra.mxu0 0.0
    %776 = vmatprep.subr.mxu0 0.0
    %777 = vmatpush1.msra.mxu0 0.0
    %778 = vmatprep.subr.mxu0 0.0
    %779 = vmatpush1.msra.mxu0 0.0
    %780 = vmatprep.subr.mxu0 0.0
    %781 = vmatpush1.msra.mxu0 0.0
    %782 = vmatprep.subr.mxu0 0.0
    %783 = vmatpush1.msra.mxu0 0.0
    %784 = vmatprep.subr.mxu0 0.0
    %785 = vmatpush1.msra.mxu0 0.0
    %786 = vmatprep.subr.mxu0 0.0
    %787 = vmatpush1.msra.mxu0 %v751
    %788 = vmatprep.subr.mxu0 0.0
    %789 = vmatpush2.msra.mxu0 0.0
    %790 = vmatprep.subr.mxu0 0.0
    %791 = vmatpush2.msra.mxu0 0.0
    %792 = vmatprep.subr.mxu0 0.0
    %793 = vmatpush2.msra.mxu0 0.0
    %794 = vmatprep.subr.mxu0 0.0
    %795 = vmatpush2.msra.mxu0 0.0
    %796 = vmatprep.subr.mxu0 0.0
    %797 = vmatpush2.msra.mxu0 0.0
    %798 = vmatprep.subr.mxu0 0.0
    %799 = vmatpush2.msra.mxu0 0.0
    %800 = vmatprep.subr.mxu0 0.0
    %801 = vmatpush2.msra.mxu0 0.0
    %802 = vmatprep.subr.mxu0 0.0
    %803 = vmatpush2.msra.mxu0 0.0
    %804 = vmatprep.subr.mxu0 0.0
    %805 = vmatpush2.msra.mxu0 0.0
    %806 = vmatprep.subr.mxu0 0.0
    %807 = vmatpush2.msra.mxu0 0.0
    %808 = vmatprep.subr.mxu0 0.0
    %809 = vmatpush2.msra.mxu0 0.0
    %810 = vmatprep.subr.mxu0 0.0
    %811 = vmatpush2.msra.mxu0 0.0
    %812 = vmatprep.subr.mxu0 0.0
    %813 = vmatpush2.msra.mxu0 0.0
    %814 = vmatprep.subr.mxu0 0.0
    %815 = vmatpush2.msra.mxu0 0.0
    %816 = vmatprep.subr.mxu0 0.0
    %817 = vmatpush2.msra.mxu0 0.0
    %818 = vmatprep.subr.mxu0 0.0
    %819 = vmatpush2.msra.mxu0 0.0
    %820 = vmatprep.mubr.f32.mxu0 0.0
    %821 = vmatmul.mubr.f32.gmra.mxu0 %v754
    %v822 = vpop.f32.mrf.mxu0
    %v823 = vadd.f32 0.0, %v822
    %v824 = vpop.f32.mrf.mxu0
    %825 = vdwg.mxu0
    %826 = vrot.lane.b32.xlu0 %v234, 56
    %v827 = vpop.permute.xlu0 %826
    %v830 = vsel %vm242, %v749, 0
    %832 = vmatprep.subr.mxu0 0.0
    %833 = vmatpush1.msra.mxu0 0.0
    %834 = vmatprep.subr.mxu0 0.0
    %835 = vmatpush1.msra.mxu0 0.0
    %836 = vmatprep.subr.mxu0 0.0
    %837 = vmatpush1.msra.mxu0 0.0
    %838 = vmatprep.subr.mxu0 0.0
    %839 = vmatpush1.msra.mxu0 0.0
    %840 = vmatprep.subr.mxu0 0.0
    %841 = vmatpush1.msra.mxu0 0.0
    %842 = vmatprep.subr.mxu0 0.0
    %843 = vmatpush1.msra.mxu0 0.0
    %844 = vmatprep.subr.mxu0 0.0
    %845 = vmatpush1.msra.mxu0 0.0
    %846 = vmatprep.subr.mxu0 0.0
    %847 = vmatpush1.msra.mxu0 0.0
    %848 = vmatprep.subr.mxu0 0.0
    %849 = vmatpush1.msra.mxu0 0.0
    %850 = vmatprep.subr.mxu0 0.0
    %851 = vmatpush1.msra.mxu0 0.0
    %852 = vmatprep.subr.mxu0 0.0
    %853 = vmatpush1.msra.mxu0 0.0
    %854 = vmatprep.subr.mxu0 0.0
    %855 = vmatpush1.msra.mxu0 0.0
    %856 = vmatprep.subr.mxu0 0.0
    %857 = vmatpush1.msra.mxu0 0.0
    %858 = vmatprep.subr.mxu0 0.0
    %859 = vmatpush1.msra.mxu0 0.0
    %860 = vmatprep.subr.mxu0 0.0
    %861 = vmatpush1.msra.mxu0 0.0
    %862 = vmatprep.subr.mxu0 0.0
    %863 = vmatpush1.msra.mxu0 %v827
    %864 = vmatprep.subr.mxu0 0.0
    %865 = vmatpush2.msra.mxu0 0.0
    %866 = vmatprep.subr.mxu0 0.0
    %867 = vmatpush2.msra.mxu0 0.0
    %868 = vmatprep.subr.mxu0 0.0
    %869 = vmatpush2.msra.mxu0 0.0
    %870 = vmatprep.subr.mxu0 0.0
    %871 = vmatpush2.msra.mxu0 0.0
    %872 = vmatprep.subr.mxu0 0.0
    %873 = vmatpush2.msra.mxu0 0.0
    %874 = vmatprep.subr.mxu0 0.0
    %875 = vmatpush2.msra.mxu0 0.0
    %876 = vmatprep.subr.mxu0 0.0
    %877 = vmatpush2.msra.mxu0 0.0
    %878 = vmatprep.subr.mxu0 0.0
    %879 = vmatpush2.msra.mxu0 0.0
    %880 = vmatprep.subr.mxu0 0.0
    %881 = vmatpush2.msra.mxu0 0.0
    %882 = vmatprep.subr.mxu0 0.0
    %883 = vmatpush2.msra.mxu0 0.0
    %884 = vmatprep.subr.mxu0 0.0
    %885 = vmatpush2.msra.mxu0 0.0
    %886 = vmatprep.subr.mxu0 0.0
    %887 = vmatpush2.msra.mxu0 0.0
    %888 = vmatprep.subr.mxu0 0.0
    %889 = vmatpush2.msra.mxu0 0.0
    %890 = vmatprep.subr.mxu0 0.0
    %891 = vmatpush2.msra.mxu0 0.0
    %892 = vmatprep.subr.mxu0 0.0
    %893 = vmatpush2.msra.mxu0 0.0
    %894 = vmatprep.subr.mxu0 0.0
    %895 = vmatpush2.msra.mxu0 0.0
    %896 = vmatprep.mubr.f32.mxu0 0.0
    %897 = vmatmul.mubr.f32.gmra.mxu0 %v830
    %v898 = vpop.f32.mrf.mxu0
    %v899 = vadd.f32 0.0, %v898
    %v900 = vpop.f32.mrf.mxu0
    %901 = vdwg.mxu0
    %904 = vrot.lane.b32.xlu0 %v823, 8
    %v905 = vpop.permute.xlu0 %904
    %906 = vrot.lane.b32.xlu0 %v899, 8
    %v907 = vpop.permute.xlu0 %906
    %vm910 = vcmask 130112
    %911 = vst.msk [vmem:[#allocation2] sm:$0xff] %vm910, %v905
    %912 = vst.msk [vmem:[#allocation2 + $0x8] sm:$0xff] %vm910, %v907
    %913 = vrot.lane.b32.xlu0 %v237, 112
    %v914 = vpop.permute.xlu0 %913
    %915 = vrot.lane.b32.xlu0 %v229, 80
    %v916 = vpop.permute.xlu0 %915
    %v917 = vsel %vm242, %v914, 0
    %v919 = vsel %vm242, %v916, 0
    %921 = vmatprep.subr.mxu0 0.0
    %922 = vmatpush1.xpose.msra.mxu0 0.0
    %923 = vmatprep.subr.mxu0 0.0
    %924 = vmatpush1.xpose.msra.mxu0 0.0
    %925 = vmatprep.subr.mxu0 0.0
    %926 = vmatpush1.xpose.msra.mxu0 0.0
    %927 = vmatprep.subr.mxu0 0.0
    %928 = vmatpush1.xpose.msra.mxu0 0.0
    %929 = vmatprep.subr.mxu0 0.0
    %930 = vmatpush1.xpose.msra.mxu0 0.0
    %931 = vmatprep.subr.mxu0 0.0
    %932 = vmatpush1.xpose.msra.mxu0 0.0
    %933 = vmatprep.subr.mxu0 0.0
    %934 = vmatpush1.xpose.msra.mxu0 0.0
    %935 = vmatprep.subr.mxu0 0.0
    %936 = vmatpush1.xpose.msra.mxu0 0.0
    %937 = vmatprep.subr.mxu0 0.0
    %938 = vmatpush1.xpose.msra.mxu0 0.0
    %939 = vmatprep.subr.mxu0 0.0
    %940 = vmatpush1.xpose.msra.mxu0 0.0
    %941 = vmatprep.subr.mxu0 0.0
    %942 = vmatpush1.xpose.msra.mxu0 0.0
    %943 = vmatprep.subr.mxu0 0.0
    %944 = vmatpush1.xpose.msra.mxu0 0.0
    %945 = vmatprep.subr.mxu0 0.0
    %946 = vmatpush1.xpose.msra.mxu0 0.0
    %947 = vmatprep.subr.mxu0 0.0
    %948 = vmatpush1.xpose.msra.mxu0 0.0
    %949 = vmatprep.subr.mxu0 0.0
    %950 = vmatpush1.xpose.msra.mxu0 0.0
    %951 = vmatprep.subr.mxu0 0.0
    %952 = vmatpush1.xpose.msra.mxu0 %v919
    %953 = vmatprep.subr.mxu0 0.0
    %954 = vmatpush2.xpose.msra.mxu0 0.0
    %955 = vmatprep.subr.mxu0 0.0
    %956 = vmatpush2.xpose.msra.mxu0 0.0
    %957 = vmatprep.subr.mxu0 0.0
    %958 = vmatpush2.xpose.msra.mxu0 0.0
    %959 = vmatprep.subr.mxu0 0.0
    %960 = vmatpush2.xpose.msra.mxu0 0.0
    %961 = vmatprep.subr.mxu0 0.0
    %962 = vmatpush2.xpose.msra.mxu0 0.0
    %963 = vmatprep.subr.mxu0 0.0
    %964 = vmatpush2.xpose.msra.mxu0 0.0
    %965 = vmatprep.subr.mxu0 0.0
    %966 = vmatpush2.xpose.msra.mxu0 0.0
    %967 = vmatprep.subr.mxu0 0.0
    %968 = vmatpush2.xpose.msra.mxu0 0.0
    %969 = vmatprep.subr.mxu0 0.0
    %970 = vmatpush2.xpose.msra.mxu0 0.0
    %971 = vmatprep.subr.mxu0 0.0
    %972 = vmatpush2.xpose.msra.mxu0 0.0
    %973 = vmatprep.subr.mxu0 0.0
    %974 = vmatpush2.xpose.msra.mxu0 0.0
    %975 = vmatprep.subr.mxu0 0.0
    %976 = vmatpush2.xpose.msra.mxu0 0.0
    %977 = vmatprep.subr.mxu0 0.0
    %978 = vmatpush2.xpose.msra.mxu0 0.0
    %979 = vmatprep.subr.mxu0 0.0
    %980 = vmatpush2.xpose.msra.mxu0 0.0
    %981 = vmatprep.subr.mxu0 0.0
    %982 = vmatpush2.xpose.msra.mxu0 0.0
    %983 = vmatprep.subr.mxu0 0.0
    %984 = vmatpush2.xpose.msra.mxu0 0.0
    %985 = vmatprep.mubr.f32.mxu0 0.0
    %986 = vmatmul.mubr.f32.gmra.mxu0 %v917
    %v987 = vpop.f32.mrf.mxu0
    %v988 = vadd.f32 0.0, %v987
    %v989 = vpop.f32.mrf.mxu0
    %990 = vdwg.mxu0
    %991 = vrot.lane.b32.xlu0 %v238, 112
    %v992 = vpop.permute.xlu0 %991
    %993 = vrot.lane.b32.xlu0 %v234, 80
    %v994 = vpop.permute.xlu0 %993
    %v995 = vsel %vm242, %v992, 0
    %v997 = vsel %vm242, %v994, 0
    %999 = vmatprep.subr.mxu0 0.0
    %1000 = vmatpush1.xpose.msra.mxu0 0.0
    %1001 = vmatprep.subr.mxu0 0.0
    %1002 = vmatpush1.xpose.msra.mxu0 0.0
    %1003 = vmatprep.subr.mxu0 0.0
    %1004 = vmatpush1.xpose.msra.mxu0 0.0
    %1005 = vmatprep.subr.mxu0 0.0
    %1006 = vmatpush1.xpose.msra.mxu0 0.0
    %1007 = vmatprep.subr.mxu0 0.0
    %1008 = vmatpush1.xpose.msra.mxu0 0.0
    %1009 = vmatprep.subr.mxu0 0.0
    %1010 = vmatpush1.xpose.msra.mxu0 0.0
    %1011 = vmatprep.subr.mxu0 0.0
    %1012 = vmatpush1.xpose.msra.mxu0 0.0
    %1013 = vmatprep.subr.mxu0 0.0
    %1014 = vmatpush1.xpose.msra.mxu0 0.0
    %1015 = vmatprep.subr.mxu0 0.0
    %1016 = vmatpush1.xpose.msra.mxu0 0.0
    %1017 = vmatprep.subr.mxu0 0.0
    %1018 = vmatpush1.xpose.msra.mxu0 0.0
    %1019 = vmatprep.subr.mxu0 0.0
    %1020 = vmatpush1.xpose.msra.mxu0 0.0
    %1021 = vmatprep.subr.mxu0 0.0
    %1022 = vmatpush1.xpose.msra.mxu0 0.0
    %1023 = vmatprep.subr.mxu0 0.0
    %1024 = vmatpush1.xpose.msra.mxu0 0.0
    %1025 = vmatprep.subr.mxu0 0.0
    %1026 = vmatpush1.xpose.msra.mxu0 0.0
    %1027 = vmatprep.subr.mxu0 0.0
    %1028 = vmatpush1.xpose.msra.mxu0 0.0
    %1029 = vmatprep.subr.mxu0 0.0
    %1030 = vmatpush1.xpose.msra.mxu0 %v997
    %1031 = vmatprep.subr.mxu0 0.0
    %1032 = vmatpush2.xpose.msra.mxu0 0.0
    %1033 = vmatprep.subr.mxu0 0.0
    %1034 = vmatpush2.xpose.msra.mxu0 0.0
    %1035 = vmatprep.subr.mxu0 0.0
    %1036 = vmatpush2.xpose.msra.mxu0 0.0
    %1037 = vmatprep.subr.mxu0 0.0
    %1038 = vmatpush2.xpose.msra.mxu0 0.0
    %1039 = vmatprep.subr.mxu0 0.0
    %1040 = vmatpush2.xpose.msra.mxu0 0.0
    %1041 = vmatprep.subr.mxu0 0.0
    %1042 = vmatpush2.xpose.msra.mxu0 0.0
    %1043 = vmatprep.subr.mxu0 0.0
    %1044 = vmatpush2.xpose.msra.mxu0 0.0
    %1045 = vmatprep.subr.mxu0 0.0
    %1046 = vmatpush2.xpose.msra.mxu0 0.0
    %1047 = vmatprep.subr.mxu0 0.0
    %1048 = vmatpush2.xpose.msra.mxu0 0.0
    %1049 = vmatprep.subr.mxu0 0.0
    %1050 = vmatpush2.xpose.msra.mxu0 0.0
    %1051 = vmatprep.subr.mxu0 0.0
    %1052 = vmatpush2.xpose.msra.mxu0 0.0
    %1053 = vmatprep.subr.mxu0 0.0
    %1054 = vmatpush2.xpose.msra.mxu0 0.0
    %1055 = vmatprep.subr.mxu0 0.0
    %1056 = vmatpush2.xpose.msra.mxu0 0.0
    %1057 = vmatprep.subr.mxu0 0.0
    %1058 = vmatpush2.xpose.msra.mxu0 0.0
    %1059 = vmatprep.subr.mxu0 0.0
    %1060 = vmatpush2.xpose.msra.mxu0 0.0
    %1061 = vmatprep.subr.mxu0 0.0
    %1062 = vmatpush2.xpose.msra.mxu0 0.0
    %1063 = vmatprep.mubr.f32.mxu0 0.0
    %1064 = vmatmul.mubr.f32.gmra.mxu0 %v995
    %v1065 = vpop.f32.mrf.mxu0
    %v1066 = vadd.f32 0.0, %v1065
    %v1067 = vpop.f32.mrf.mxu0
    %1068 = vdwg.mxu0
    %v1069 = vsel %vm242, %v988, -inf
    %1070 = vmax.xlane.f32.xlu0 %v1069
    %v1071 = vpop.xlane.xlu0 %1070
    %v1072 = vsel %vm242, %v1066, -inf
    %1073 = vmax.xlane.f32.xlu0 %v1072
    %v1074 = vpop.xlane.xlu0 %1073
    %v1075 = vsub.f32 %v988, %v1071
    %v1076 = vsub.f32 %v1066, %v1074
    %v1077 = vmul.f32 %v1075, 1.442695
    %v1078 = vpow.pop %v1077
    %v1079 = vmul.f32 %v1076, 1.442695
    %v1080 = vpow.pop %v1079
    %v1081 = vsel %vm242, %v1078, 0.0
    %1082 = vadd.xlane.f32.xlu0 %v1081
    %v1083 = vpop.xlane.xlu0 %1082
    %v1084 = vsel %vm242, %v1080, 0.0
    %1085 = vadd.xlane.f32.xlu0 %v1084
    %v1086 = vpop.xlane.xlu0 %1085
    %v1087 = vrcp.pop %v1083
    %v1088 = vrcp.pop %v1086
    %v1089 = vmul.f32 %v1078, %v1087
    %v1090 = vmul.f32 %v1080, %v1088
    %1091 = vrot.lane.b32.xlu0 %v229, 48
    %v1092 = vpop.permute.xlu0 %1091
    %v1095 = vsel %vm242, %v1089, 0
    %1097 = vmatprep.subr.mxu0 0.0
    %1098 = vmatpush1.msra.mxu0 0.0
    %1099 = vmatprep.subr.mxu0 0.0
    %1100 = vmatpush1.msra.mxu0 0.0
    %1101 = vmatprep.subr.mxu0 0.0
    %1102 = vmatpush1.msra.mxu0 0.0
    %1103 = vmatprep.subr.mxu0 0.0
    %1104 = vmatpush1.msra.mxu0 0.0
    %1105 = vmatprep.subr.mxu0 0.0
    %1106 = vmatpush1.msra.mxu0 0.0
    %1107 = vmatprep.subr.mxu0 0.0
    %1108 = vmatpush1.msra.mxu0 0.0
    %1109 = vmatprep.subr.mxu0 0.0
    %1110 = vmatpush1.msra.mxu0 0.0
    %1111 = vmatprep.subr.mxu0 0.0
    %1112 = vmatpush1.msra.mxu0 0.0
    %1113 = vmatprep.subr.mxu0 0.0
    %1114 = vmatpush1.msra.mxu0 0.0
    %1115 = vmatprep.subr.mxu0 0.0
    %1116 = vmatpush1.msra.mxu0 0.0
    %1117 = vmatprep.subr.mxu0 0.0
    %1118 = vmatpush1.msra.mxu0 0.0
    %1119 = vmatprep.subr.mxu0 0.0
    %1120 = vmatpush1.msra.mxu0 0.0
    %1121 = vmatprep.subr.mxu0 0.0
    %1122 = vmatpush1.msra.mxu0 0.0
    %1123 = vmatprep.subr.mxu0 0.0
    %1124 = vmatpush1.msra.mxu0 0.0
    %1125 = vmatprep.subr.mxu0 0.0
    %1126 = vmatpush1.msra.mxu0 0.0
    %1127 = vmatprep.subr.mxu0 0.0
    %1128 = vmatpush1.msra.mxu0 %v1092
    %1129 = vmatprep.subr.mxu0 0.0
    %1130 = vmatpush2.msra.mxu0 0.0
    %1131 = vmatprep.subr.mxu0 0.0
    %1132 = vmatpush2.msra.mxu0 0.0
    %1133 = vmatprep.subr.mxu0 0.0
    %1134 = vmatpush2.msra.mxu0 0.0
    %1135 = vmatprep.subr.mxu0 0.0
    %1136 = vmatpush2.msra.mxu0 0.0
    %1137 = vmatprep.subr.mxu0 0.0
    %1138 = vmatpush2.msra.mxu0 0.0
    %1139 = vmatprep.subr.mxu0 0.0
    %1140 = vmatpush2.msra.mxu0 0.0
    %1141 = vmatprep.subr.mxu0 0.0
    %1142 = vmatpush2.msra.mxu0 0.0
    %1143 = vmatprep.subr.mxu0 0.0
    %1144 = vmatpush2.msra.mxu0 0.0
    %1145 = vmatprep.subr.mxu0 0.0
    %1146 = vmatpush2.msra.mxu0 0.0
    %1147 = vmatprep.subr.mxu0 0.0
    %1148 = vmatpush2.msra.mxu0 0.0
    %1149 = vmatprep.subr.mxu0 0.0
    %1150 = vmatpush2.msra.mxu0 0.0
    %1151 = vmatprep.subr.mxu0 0.0
    %1152 = vmatpush2.msra.mxu0 0.0
    %1153 = vmatprep.subr.mxu0 0.0
    %1154 = vmatpush2.msra.mxu0 0.0
    %1155 = vmatprep.subr.mxu0 0.0
    %1156 = vmatpush2.msra.mxu0 0.0
    %1157 = vmatprep.subr.mxu0 0.0
    %1158 = vmatpush2.msra.mxu0 0.0
    %1159 = vmatprep.subr.mxu0 0.0
    %1160 = vmatpush2.msra.mxu0 0.0
    %1161 = vmatprep.mubr.f32.mxu0 0.0
    %1162 = vmatmul.mubr.f32.gmra.mxu0 %v1095
    %v1163 = vpop.f32.mrf.mxu0
    %v1164 = vadd.f32 0.0, %v1163
    %v1165 = vpop.f32.mrf.mxu0
    %1166 = vdwg.mxu0
    %1167 = vrot.lane.b32.xlu0 %v234, 48
    %v1168 = vpop.permute.xlu0 %1167
    %v1171 = vsel %vm242, %v1090, 0
    %1173 = vmatprep.subr.mxu0 0.0
    %1174 = vmatpush1.msra.mxu0 0.0
    %1175 = vmatprep.subr.mxu0 0.0
    %1176 = vmatpush1.msra.mxu0 0.0
    %1177 = vmatprep.subr.mxu0 0.0
    %1178 = vmatpush1.msra.mxu0 0.0
    %1179 = vmatprep.subr.mxu0 0.0
    %1180 = vmatpush1.msra.mxu0 0.0
    %1181 = vmatprep.subr.mxu0 0.0
    %1182 = vmatpush1.msra.mxu0 0.0
    %1183 = vmatprep.subr.mxu0 0.0
    %1184 = vmatpush1.msra.mxu0 0.0
    %1185 = vmatprep.subr.mxu0 0.0
    %1186 = vmatpush1.msra.mxu0 0.0
    %1187 = vmatprep.subr.mxu0 0.0
    %1188 = vmatpush1.msra.mxu0 0.0
    %1189 = vmatprep.subr.mxu0 0.0
    %1190 = vmatpush1.msra.mxu0 0.0
    %1191 = vmatprep.subr.mxu0 0.0
    %1192 = vmatpush1.msra.mxu0 0.0
    %1193 = vmatprep.subr.mxu0 0.0
    %1194 = vmatpush1.msra.mxu0 0.0
    %1195 = vmatprep.subr.mxu0 0.0
    %1196 = vmatpush1.msra.mxu0 0.0
    %1197 = vmatprep.subr.mxu0 0.0
    %1198 = vmatpush1.msra.mxu0 0.0
    %1199 = vmatprep.subr.mxu0 0.0
    %1200 = vmatpush1.msra.mxu0 0.0
    %1201 = vmatprep.subr.mxu0 0.0
    %1202 = vmatpush1.msra.mxu0 0.0
    %1203 = vmatprep.subr.mxu0 0.0
    %1204 = vmatpush1.msra.mxu0 %v1168
    %1205 = vmatprep.subr.mxu0 0.0
    %1206 = vmatpush2.msra.mxu0 0.0
    %1207 = vmatprep.subr.mxu0 0.0
    %1208 = vmatpush2.msra.mxu0 0.0
    %1209 = vmatprep.subr.mxu0 0.0
    %1210 = vmatpush2.msra.mxu0 0.0
    %1211 = vmatprep.subr.mxu0 0.0
    %1212 = vmatpush2.msra.mxu0 0.0
    %1213 = vmatprep.subr.mxu0 0.0
    %1214 = vmatpush2.msra.mxu0 0.0
    %1215 = vmatprep.subr.mxu0 0.0
    %1216 = vmatpush2.msra.mxu0 0.0
    %1217 = vmatprep.subr.mxu0 0.0
    %1218 = vmatpush2.msra.mxu0 0.0
    %1219 = vmatprep.subr.mxu0 0.0
    %1220 = vmatpush2.msra.mxu0 0.0
    %1221 = vmatprep.subr.mxu0 0.0
    %1222 = vmatpush2.msra.mxu0 0.0
    %1223 = vmatprep.subr.mxu0 0.0
    %1224 = vmatpush2.msra.mxu0 0.0
    %1225 = vmatprep.subr.mxu0 0.0
    %1226 = vmatpush2.msra.mxu0 0.0
    %1227 = vmatprep.subr.mxu0 0.0
    %1228 = vmatpush2.msra.mxu0 0.0
    %1229 = vmatprep.subr.mxu0 0.0
    %1230 = vmatpush2.msra.mxu0 0.0
    %1231 = vmatprep.subr.mxu0 0.0
    %1232 = vmatpush2.msra.mxu0 0.0
    %1233 = vmatprep.subr.mxu0 0.0
    %1234 = vmatpush2.msra.mxu0 0.0
    %1235 = vmatprep.subr.mxu0 0.0
    %1236 = vmatpush2.msra.mxu0 0.0
    %1237 = vmatprep.mubr.f32.mxu0 0.0
    %1238 = vmatmul.mubr.f32.gmra.mxu0 %v1171
    %v1239 = vpop.f32.mrf.mxu0
    %v1240 = vadd.f32 0.0, %v1239
    %v1241 = vpop.f32.mrf.mxu0
    %1242 = vdwg.mxu0
    %1245 = vrot.lane.b32.xlu0 %v1164, 16
    %v1246 = vpop.permute.xlu0 %1245
    %1247 = vrot.lane.b32.xlu0 %v1240, 16
    %v1248 = vpop.permute.xlu0 %1247
    %vm1251 = vcmask 195712
    %1252 = vst.msk [vmem:[#allocation2] sm:$0xff] %vm1251, %v1246
    %1253 = vst.msk [vmem:[#allocation2 + $0x8] sm:$0xff] %vm1251, %v1248
    %1254 = vrot.lane.b32.xlu0 %v237, 104
    %v1255 = vpop.permute.xlu0 %1254
    %1256 = vrot.lane.b32.xlu0 %v229, 72
    %v1257 = vpop.permute.xlu0 %1256
    %v1258 = vsel %vm242, %v1255, 0
    %v1260 = vsel %vm242, %v1257, 0
    %1262 = vmatprep.subr.mxu0 0.0
    %1263 = vmatpush1.xpose.msra.mxu0 0.0
    %1264 = vmatprep.subr.mxu0 0.0
    %1265 = vmatpush1.xpose.msra.mxu0 0.0
    %1266 = vmatprep.subr.mxu0 0.0
    %1267 = vmatpush1.xpose.msra.mxu0 0.0
    %1268 = vmatprep.subr.mxu0 0.0
    %1269 = vmatpush1.xpose.msra.mxu0 0.0
    %1270 = vmatprep.subr.mxu0 0.0
    %1271 = vmatpush1.xpose.msra.mxu0 0.0
    %1272 = vmatprep.subr.mxu0 0.0
    %1273 = vmatpush1.xpose.msra.mxu0 0.0
    %1274 = vmatprep.subr.mxu0 0.0
    %1275 = vmatpush1.xpose.msra.mxu0 0.0
    %1276 = vmatprep.subr.mxu0 0.0
    %1277 = vmatpush1.xpose.msra.mxu0 0.0
    %1278 = vmatprep.subr.mxu0 0.0
    %1279 = vmatpush1.xpose.msra.mxu0 0.0
    %1280 = vmatprep.subr.mxu0 0.0
    %1281 = vmatpush1.xpose.msra.mxu0 0.0
    %1282 = vmatprep.subr.mxu0 0.0
    %1283 = vmatpush1.xpose.msra.mxu0 0.0
    %1284 = vmatprep.subr.mxu0 0.0
    %1285 = vmatpush1.xpose.msra.mxu0 0.0
    %1286 = vmatprep.subr.mxu0 0.0
    %1287 = vmatpush1.xpose.msra.mxu0 0.0
    %1288 = vmatprep.subr.mxu0 0.0
    %1289 = vmatpush1.xpose.msra.mxu0 0.0
    %1290 = vmatprep.subr.mxu0 0.0
    %1291 = vmatpush1.xpose.msra.mxu0 0.0
    %1292 = vmatprep.subr.mxu0 0.0
    %1293 = vmatpush1.xpose.msra.mxu0 %v1260
    %1294 = vmatprep.subr.mxu0 0.0
    %1295 = vmatpush2.xpose.msra.mxu0 0.0
    %1296 = vmatprep.subr.mxu0 0.0
    %1297 = vmatpush2.xpose.msra.mxu0 0.0
    %1298 = vmatprep.subr.mxu0 0.0
    %1299 = vmatpush2.xpose.msra.mxu0 0.0
    %1300 = vmatprep.subr.mxu0 0.0
    %1301 = vmatpush2.xpose.msra.mxu0 0.0
    %1302 = vmatprep.subr.mxu0 0.0
    %1303 = vmatpush2.xpose.msra.mxu0 0.0
    %1304 = vmatprep.subr.mxu0 0.0
    %1305 = vmatpush2.xpose.msra.mxu0 0.0
    %1306 = vmatprep.subr.mxu0 0.0
    %1307 = vmatpush2.xpose.msra.mxu0 0.0
    %1308 = vmatprep.subr.mxu0 0.0
    %1309 = vmatpush2.xpose.msra.mxu0 0.0
    %1310 = vmatprep.subr.mxu0 0.0
    %1311 = vmatpush2.xpose.msra.mxu0 0.0
    %1312 = vmatprep.subr.mxu0 0.0
    %1313 = vmatpush2.xpose.msra.mxu0 0.0
    %1314 = vmatprep.subr.mxu0 0.0
    %1315 = vmatpush2.xpose.msra.mxu0 0.0
    %1316 = vmatprep.subr.mxu0 0.0
    %1317 = vmatpush2.xpose.msra.mxu0 0.0
    %1318 = vmatprep.subr.mxu0 0.0
    %1319 = vmatpush2.xpose.msra.mxu0 0.0
    %1320 = vmatprep.subr.mxu0 0.0
    %1321 = vmatpush2.xpose.msra.mxu0 0.0
    %1322 = vmatprep.subr.mxu0 0.0
    %1323 = vmatpush2.xpose.msra.mxu0 0.0
    %1324 = vmatprep.subr.mxu0 0.0
    %1325 = vmatpush2.xpose.msra.mxu0 0.0
    %1326 = vmatprep.mubr.f32.mxu0 0.0
    %1327 = vmatmul.mubr.f32.gmra.mxu0 %v1258
    %v1328 = vpop.f32.mrf.mxu0
    %v1329 = vadd.f32 0.0, %v1328
    %v1330 = vpop.f32.mrf.mxu0
    %1331 = vdwg.mxu0
    %1332 = vrot.lane.b32.xlu0 %v238, 104
    %v1333 = vpop.permute.xlu0 %1332
    %1334 = vrot.lane.b32.xlu0 %v234, 72
    %v1335 = vpop.permute.xlu0 %1334
    %v1336 = vsel %vm242, %v1333, 0
    %v1338 = vsel %vm242, %v1335, 0
    %1340 = vmatprep.subr.mxu0 0.0
    %1341 = vmatpush1.xpose.msra.mxu0 0.0
    %1342 = vmatprep.subr.mxu0 0.0
    %1343 = vmatpush1.xpose.msra.mxu0 0.0
    %1344 = vmatprep.subr.mxu0 0.0
    %1345 = vmatpush1.xpose.msra.mxu0 0.0
    %1346 = vmatprep.subr.mxu0 0.0
    %1347 = vmatpush1.xpose.msra.mxu0 0.0
    %1348 = vmatprep.subr.mxu0 0.0
    %1349 = vmatpush1.xpose.msra.mxu0 0.0
    %1350 = vmatprep.subr.mxu0 0.0
    %1351 = vmatpush1.xpose.msra.mxu0 0.0
    %1352 = vmatprep.subr.mxu0 0.0
    %1353 = vmatpush1.xpose.msra.mxu0 0.0
    %1354 = vmatprep.subr.mxu0 0.0
    %1355 = vmatpush1.xpose.msra.mxu0 0.0
    %1356 = vmatprep.subr.mxu0 0.0
    %1357 = vmatpush1.xpose.msra.mxu0 0.0
    %1358 = vmatprep.subr.mxu0 0.0
    %1359 = vmatpush1.xpose.msra.mxu0 0.0
    %1360 = vmatprep.subr.mxu0 0.0
    %1361 = vmatpush1.xpose.msra.mxu0 0.0
    %1362 = vmatprep.subr.mxu0 0.0
    %1363 = vmatpush1.xpose.msra.mxu0 0.0
    %1364 = vmatprep.subr.mxu0 0.0
    %1365 = vmatpush1.xpose.msra.mxu0 0.0
    %1366 = vmatprep.subr.mxu0 0.0
    %1367 = vmatpush1.xpose.msra.mxu0 0.0
    %1368 = vmatprep.subr.mxu0 0.0
    %1369 = vmatpush1.xpose.msra.mxu0 0.0
    %1370 = vmatprep.subr.mxu0 0.0
    %1371 = vmatpush1.xpose.msra.mxu0 %v1338
    %1372 = vmatprep.subr.mxu0 0.0
    %1373 = vmatpush2.xpose.msra.mxu0 0.0
    %1374 = vmatprep.subr.mxu0 0.0
    %1375 = vmatpush2.xpose.msra.mxu0 0.0
    %1376 = vmatprep.subr.mxu0 0.0
    %1377 = vmatpush2.xpose.msra.mxu0 0.0
    %1378 = vmatprep.subr.mxu0 0.0
    %1379 = vmatpush2.xpose.msra.mxu0 0.0
    %1380 = vmatprep.subr.mxu0 0.0
    %1381 = vmatpush2.xpose.msra.mxu0 0.0
    %1382 = vmatprep.subr.mxu0 0.0
    %1383 = vmatpush2.xpose.msra.mxu0 0.0
    %1384 = vmatprep.subr.mxu0 0.0
    %1385 = vmatpush2.xpose.msra.mxu0 0.0
    %1386 = vmatprep.subr.mxu0 0.0
    %1387 = vmatpush2.xpose.msra.mxu0 0.0
    %1388 = vmatprep.subr.mxu0 0.0
    %1389 = vmatpush2.xpose.msra.mxu0 0.0
    %1390 = vmatprep.subr.mxu0 0.0
    %1391 = vmatpush2.xpose.msra.mxu0 0.0
    %1392 = vmatprep.subr.mxu0 0.0
    %1393 = vmatpush2.xpose.msra.mxu0 0.0
    %1394 = vmatprep.subr.mxu0 0.0
    %1395 = vmatpush2.xpose.msra.mxu0 0.0
    %1396 = vmatprep.subr.mxu0 0.0
    %1397 = vmatpush2.xpose.msra.mxu0 0.0
    %1398 = vmatprep.subr.mxu0 0.0
    %1399 = vmatpush2.xpose.msra.mxu0 0.0
    %1400 = vmatprep.subr.mxu0 0.0
    %1401 = vmatpush2.xpose.msra.mxu0 0.0
    %1402 = vmatprep.subr.mxu0 0.0
    %1403 = vmatpush2.xpose.msra.mxu0 0.0
    %1404 = vmatprep.mubr.f32.mxu0 0.0
    %1405 = vmatmul.mubr.f32.gmra.mxu0 %v1336
    %v1406 = vpop.f32.mrf.mxu0
    %v1407 = vadd.f32 0.0, %v1406
    %v1408 = vpop.f32.mrf.mxu0
    %1409 = vdwg.mxu0
    %v1410 = vsel %vm242, %v1329, -inf
    %1411 = vmax.xlane.f32.xlu0 %v1410
    %v1412 = vpop.xlane.xlu0 %1411
    %v1413 = vsel %vm242, %v1407, -inf
    %1414 = vmax.xlane.f32.xlu0 %v1413
    %v1415 = vpop.xlane.xlu0 %1414
    %v1416 = vsub.f32 %v1329, %v1412
    %v1417 = vsub.f32 %v1407, %v1415
    %v1418 = vmul.f32 %v1416, 1.442695
    %v1419 = vpow.pop %v1418
    %v1420 = vmul.f32 %v1417, 1.442695
    %v1421 = vpow.pop %v1420
    %v1422 = vsel %vm242, %v1419, 0.0
    %1423 = vadd.xlane.f32.xlu0 %v1422
    %v1424 = vpop.xlane.xlu0 %1423
    %v1425 = vsel %vm242, %v1421, 0.0
    %1426 = vadd.xlane.f32.xlu0 %v1425
    %v1427 = vpop.xlane.xlu0 %1426
    %v1428 = vrcp.pop %v1424
    %v1429 = vrcp.pop %v1427
    %v1430 = vmul.f32 %v1419, %v1428
    %v1431 = vmul.f32 %v1421, %v1429
    %1432 = vrot.lane.b32.xlu0 %v229, 40
    %v1433 = vpop.permute.xlu0 %1432
    %v1436 = vsel %vm242, %v1430, 0
    %1438 = vmatprep.subr.mxu0 0.0
    %1439 = vmatpush1.msra.mxu0 0.0
    %1440 = vmatprep.subr.mxu0 0.0
    %1441 = vmatpush1.msra.mxu0 0.0
    %1442 = vmatprep.subr.mxu0 0.0
    %1443 = vmatpush1.msra.mxu0 0.0
    %1444 = vmatprep.subr.mxu0 0.0
    %1445 = vmatpush1.msra.mxu0 0.0
    %1446 = vmatprep.subr.mxu0 0.0
    %1447 = vmatpush1.msra.mxu0 0.0
    %1448 = vmatprep.subr.mxu0 0.0
    %1449 = vmatpush1.msra.mxu0 0.0
    %1450 = vmatprep.subr.mxu0 0.0
    %1451 = vmatpush1.msra.mxu0 0.0
    %1452 = vmatprep.subr.mxu0 0.0
    %1453 = vmatpush1.msra.mxu0 0.0
    %1454 = vmatprep.subr.mxu0 0.0
    %1455 = vmatpush1.msra.mxu0 0.0
    %1456 = vmatprep.subr.mxu0 0.0
    %1457 = vmatpush1.msra.mxu0 0.0
    %1458 = vmatprep.subr.mxu0 0.0
    %1459 = vmatpush1.msra.mxu0 0.0
    %1460 = vmatprep.subr.mxu0 0.0
    %1461 = vmatpush1.msra.mxu0 0.0
    %1462 = vmatprep.subr.mxu0 0.0
    %1463 = vmatpush1.msra.mxu0 0.0
    %1464 = vmatprep.subr.mxu0 0.0
    %1465 = vmatpush1.msra.mxu0 0.0
    %1466 = vmatprep.subr.mxu0 0.0
    %1467 = vmatpush1.msra.mxu0 0.0
    %1468 = vmatprep.subr.mxu0 0.0
    %1469 = vmatpush1.msra.mxu0 %v1433
    %1470 = vmatprep.subr.mxu0 0.0
    %1471 = vmatpush2.msra.mxu0 0.0
    %1472 = vmatprep.subr.mxu0 0.0
    %1473 = vmatpush2.msra.mxu0 0.0
    %1474 = vmatprep.subr.mxu0 0.0
    %1475 = vmatpush2.msra.mxu0 0.0
    %1476 = vmatprep.subr.mxu0 0.0
    %1477 = vmatpush2.msra.mxu0 0.0
    %1478 = vmatprep.subr.mxu0 0.0
    %1479 = vmatpush2.msra.mxu0 0.0
    %1480 = vmatprep.subr.mxu0 0.0
    %1481 = vmatpush2.msra.mxu0 0.0
    %1482 = vmatprep.subr.mxu0 0.0
    %1483 = vmatpush2.msra.mxu0 0.0
    %1484 = vmatprep.subr.mxu0 0.0
    %1485 = vmatpush2.msra.mxu0 0.0
    %1486 = vmatprep.subr.mxu0 0.0
    %1487 = vmatpush2.msra.mxu0 0.0
    %1488 = vmatprep.subr.mxu0 0.0
    %1489 = vmatpush2.msra.mxu0 0.0
    %1490 = vmatprep.subr.mxu0 0.0
    %1491 = vmatpush2.msra.mxu0 0.0
    %1492 = vmatprep.subr.mxu0 0.0
    %1493 = vmatpush2.msra.mxu0 0.0
    %1494 = vmatprep.subr.mxu0 0.0
    %1495 = vmatpush2.msra.mxu0 0.0
    %1496 = vmatprep.subr.mxu0 0.0
    %1497 = vmatpush2.msra.mxu0 0.0
    %1498 = vmatprep.subr.mxu0 0.0
    %1499 = vmatpush2.msra.mxu0 0.0
    %1500 = vmatprep.subr.mxu0 0.0
    %1501 = vmatpush2.msra.mxu0 0.0
    %1502 = vmatprep.mubr.f32.mxu0 0.0
    %1503 = vmatmul.mubr.f32.gmra.mxu0 %v1436
    %v1504 = vpop.f32.mrf.mxu0
    %v1505 = vadd.f32 0.0, %v1504
    %v1506 = vpop.f32.mrf.mxu0
    %1507 = vdwg.mxu0
    %1508 = vrot.lane.b32.xlu0 %v234, 40
    %v1509 = vpop.permute.xlu0 %1508
    %v1512 = vsel %vm242, %v1431, 0
    %1514 = vmatprep.subr.mxu0 0.0
    %1515 = vmatpush1.msra.mxu0 0.0
    %1516 = vmatprep.subr.mxu0 0.0
    %1517 = vmatpush1.msra.mxu0 0.0
    %1518 = vmatprep.subr.mxu0 0.0
    %1519 = vmatpush1.msra.mxu0 0.0
    %1520 = vmatprep.subr.mxu0 0.0
    %1521 = vmatpush1.msra.mxu0 0.0
    %1522 = vmatprep.subr.mxu0 0.0
    %1523 = vmatpush1.msra.mxu0 0.0
    %1524 = vmatprep.subr.mxu0 0.0
    %1525 = vmatpush1.msra.mxu0 0.0
    %1526 = vmatprep.subr.mxu0 0.0
    %1527 = vmatpush1.msra.mxu0 0.0
    %1528 = vmatprep.subr.mxu0 0.0
    %1529 = vmatpush1.msra.mxu0 0.0
    %1530 = vmatprep.subr.mxu0 0.0
    %1531 = vmatpush1.msra.mxu0 0.0
    %1532 = vmatprep.subr.mxu0 0.0
    %1533 = vmatpush1.msra.mxu0 0.0
    %1534 = vmatprep.subr.mxu0 0.0
    %1535 = vmatpush1.msra.mxu0 0.0
    %1536 = vmatprep.subr.mxu0 0.0
    %1537 = vmatpush1.msra.mxu0 0.0
    %1538 = vmatprep.subr.mxu0 0.0
    %1539 = vmatpush1.msra.mxu0 0.0
    %1540 = vmatprep.subr.mxu0 0.0
    %1541 = vmatpush1.msra.mxu0 0.0
    %1542 = vmatprep.subr.mxu0 0.0
    %1543 = vmatpush1.msra.mxu0 0.0
    %1544 = vmatprep.subr.mxu0 0.0
    %1545 = vmatpush1.msra.mxu0 %v1509
    %1546 = vmatprep.subr.mxu0 0.0
    %1547 = vmatpush2.msra.mxu0 0.0
    %1548 = vmatprep.subr.mxu0 0.0
    %1549 = vmatpush2.msra.mxu0 0.0
    %1550 = vmatprep.subr.mxu0 0.0
    %1551 = vmatpush2.msra.mxu0 0.0
    %1552 = vmatprep.subr.mxu0 0.0
    %1553 = vmatpush2.msra.mxu0 0.0
    %1554 = vmatprep.subr.mxu0 0.0
    %1555 = vmatpush2.msra.mxu0 0.0
    %1556 = vmatprep.subr.mxu0 0.0
    %1557 = vmatpush2.msra.mxu0 0.0
    %1558 = vmatprep.subr.mxu0 0.0
    %1559 = vmatpush2.msra.mxu0 0.0
    %1560 = vmatprep.subr.mxu0 0.0
    %1561 = vmatpush2.msra.mxu0 0.0
    %1562 = vmatprep.subr.mxu0 0.0
    %1563 = vmatpush2.msra.mxu0 0.0
    %1564 = vmatprep.subr.mxu0 0.0
    %1565 = vmatpush2.msra.mxu0 0.0
    %1566 = vmatprep.subr.mxu0 0.0
    %1567 = vmatpush2.msra.mxu0 0.0
    %1568 = vmatprep.subr.mxu0 0.0
    %1569 = vmatpush2.msra.mxu0 0.0
    %1570 = vmatprep.subr.mxu0 0.0
    %1571 = vmatpush2.msra.mxu0 0.0
    %1572 = vmatprep.subr.mxu0 0.0
    %1573 = vmatpush2.msra.mxu0 0.0
    %1574 = vmatprep.subr.mxu0 0.0
    %1575 = vmatpush2.msra.mxu0 0.0
    %1576 = vmatprep.subr.mxu0 0.0
    %1577 = vmatpush2.msra.mxu0 0.0
    %1578 = vmatprep.mubr.f32.mxu0 0.0
    %1579 = vmatmul.mubr.f32.gmra.mxu0 %v1512
    %v1580 = vpop.f32.mrf.mxu0
    %v1581 = vadd.f32 0.0, %v1580
    %v1582 = vpop.f32.mrf.mxu0
    %1583 = vdwg.mxu0
    %1586 = vrot.lane.b32.xlu0 %v1505, 24
    %v1587 = vpop.permute.xlu0 %1586
    %1588 = vrot.lane.b32.xlu0 %v1581, 24
    %v1589 = vpop.permute.xlu0 %1588
    %vm1592 = vcmask 261312
    %1593 = vst.msk [vmem:[#allocation2] sm:$0xff] %vm1592, %v1587
    %1594 = vst.msk [vmem:[#allocation2 + $0x8] sm:$0xff] %vm1592, %v1589
    %v1595 = vld [vmem:[#allocation2] sm:$0xff]
    %v1596 = vld [vmem:[#allocation2 + $0x8] sm:$0xff]
    %v1597 = vld [vmem:[#allocation3] sm:$0xff]
    %v1598 = vld [vmem:[#allocation3 + $0x8] sm:$0xff]
    %v1599 = vld [vmem:[#allocation3 + $0x10] sm:$0xff]
    %v1600 = vld [vmem:[#allocation3 + $0x18] sm:$0xff]
    %v1601 = vld [vmem:[#allocation5] sm:$0x1]
    %v1603 = vlaneseq
    %v1604 = vshrl.u32 %v1603, 7
    %v1605 = vsub.s32 0, %v1604
    %v1606 = vrot.slane %v1601, %v1605
    %v1609 = vsel %vm155, %v1595, 0
    %v1612 = vsel %vm155, %v1596, 0
    %1614 = vmatprep.subr.mxu0 0.0
    %1615 = vmatpush1.msra.mxu0 0.0
    %1616 = vmatprep.subr.mxu0 0.0
    %1617 = vmatpush1.msra.mxu0 0.0
    %1618 = vmatprep.subr.mxu0 0.0
    %1619 = vmatpush1.msra.mxu0 0.0
    %1620 = vmatprep.subr.mxu0 0.0
    %1621 = vmatpush1.msra.mxu0 0.0
    %1622 = vmatprep.subr.mxu0 0.0
    %1623 = vmatpush1.msra.mxu0 0.0
    %1624 = vmatprep.subr.mxu0 0.0
    %1625 = vmatpush1.msra.mxu0 0.0
    %1626 = vmatprep.subr.mxu0 0.0
    %1627 = vmatpush1.msra.mxu0 0.0
    %1628 = vmatprep.subr.mxu0 0.0
    %1629 = vmatpush1.msra.mxu0 0.0
    %1630 = vmatprep.subr.mxu0 0.0
    %1631 = vmatpush1.msra.mxu0 0.0
    %1632 = vmatprep.subr.mxu0 0.0
    %1633 = vmatpush1.msra.mxu0 0.0
    %1634 = vmatprep.subr.mxu0 0.0
    %1635 = vmatpush1.msra.mxu0 0.0
    %1636 = vmatprep.subr.mxu0 0.0
    %1637 = vmatpush1.msra.mxu0 0.0
    %1638 = vmatprep.subr.mxu0 0.0
    %1639 = vmatpush1.msra.mxu0 %v1600
    %1640 = vmatprep.subr.mxu0 0.0
    %1641 = vmatpush1.msra.mxu0 %v1599
    %1642 = vmatprep.subr.mxu0 0.0
    %1643 = vmatpush1.msra.mxu0 %v1598
    %1644 = vmatprep.subr.mxu0 0.0
    %1645 = vmatpush1.msra.mxu0 %v1597
    %1646 = vmatprep.subr.mxu0 0.0
    %1647 = vmatpush2.msra.mxu0 0.0
    %1648 = vmatprep.subr.mxu0 0.0
    %1649 = vmatpush2.msra.mxu0 0.0
    %1650 = vmatprep.subr.mxu0 0.0
    %1651 = vmatpush2.msra.mxu0 0.0
    %1652 = vmatprep.subr.mxu0 0.0
    %1653 = vmatpush2.msra.mxu0 0.0
    %1654 = vmatprep.subr.mxu0 0.0
    %1655 = vmatpush2.msra.mxu0 0.0
    %1656 = vmatprep.subr.mxu0 0.0
    %1657 = vmatpush2.msra.mxu0 0.0
    %1658 = vmatprep.subr.mxu0 0.0
    %1659 = vmatpush2.msra.mxu0 0.0
    %1660 = vmatprep.subr.mxu0 0.0
    %1661 = vmatpush2.msra.mxu0 0.0
    %1662 = vmatprep.subr.mxu0 0.0
    %1663 = vmatpush2.msra.mxu0 0.0
    %1664 = vmatprep.subr.mxu0 0.0
    %1665 = vmatpush2.msra.mxu0 0.0
    %1666 = vmatprep.subr.mxu0 0.0
    %1667 = vmatpush2.msra.mxu0 0.0
    %1668 = vmatprep.subr.mxu0 0.0
    %1669 = vmatpush2.msra.mxu0 0.0
    %1670 = vmatprep.subr.mxu0 0.0
    %1671 = vmatpush2.msra.mxu0 0.0
    %1672 = vmatprep.subr.mxu0 0.0
    %1673 = vmatpush2.msra.mxu0 0.0
    %1674 = vmatprep.subr.mxu0 0.0
    %1675 = vmatpush2.msra.mxu0 0.0
    %1676 = vmatprep.subr.mxu0 0.0
    %1677 = vmatpush2.msra.mxu0 0.0
    %1678 = vmatprep.mubr.f32.mxu0 0.0
    %1679 = vmatmul.mubr.f32.gmra.mxu0 %v1609
    %v1680 = vpop.f32.mrf.mxu0
    %v1681 = vadd.f32 %v1606, %v1680
    %v1682 = vpop.f32.mrf.mxu0
    %1683 = vmatprep.mubr.f32.mxu0 0.0
    %1684 = vmatmul.mubr.f32.gmra.mxu0 %v1612
    %v1685 = vpop.f32.mrf.mxu0
    %v1686 = vadd.f32 %v1606, %v1685
    %v1687 = vpop.f32.mrf.mxu0
    %1688 = vdwg.mxu0
    %v1689 = vadd.f32 %v149, %v1681
    %v1690 = vadd.f32 %v150, %v1686
    %v1691 = vld [vmem:[#allocation7] sm:$0x1]
    %v1692 = vld [vmem:[#allocation8] sm:$0x1]
    %v1693 = vsel %vm155, %v1689, 0.0
    %1694 = vadd.xlane.f32.xlu0 %v1693
    %v1695 = vpop.xlane.xlu0 %1694
    %v1696 = vsel %vm155, %v1690, 0.0
    %1697 = vadd.xlane.f32.xlu0 %v1696
    %v1698 = vpop.xlane.xlu0 %1697
    %v1699 = vrcp.pop 32.0
    %v1700 = vmul.f32 %v1695, %v1699
    %v1701 = vmul.f32 %v1698, %v1699
    %v1702 = vsub.f32 %v1689, %v1700
    %v1703 = vsub.f32 %v1690, %v1701
    %v1704 = vmul.f32 %v1702, %v1702
    %v1705 = vmul.f32 %v1703, %v1703
    %v1706 = vsel %vm155, %v1704, 0.0
    %1707 = vadd.xlane.f32.xlu0 %v1706
    %v1708 = vpop.xlane.xlu0 %1707
    %v1709 = vsel %vm155, %v1705, 0.0
    %1710 = vadd.xlane.f32.xlu0 %v1709
    %v1711 = vpop.xlane.xlu0 %1710
    %v1712 = vmul.f32 %v1708, %v1699
    %v1713 = vmul.f32 %v1711, %v1699
    %v1714 = vadd.f32 %v1712, 1e-06
    %v1715 = vadd.f32 %v1713, 1e-06
    %v1716 = vrsqrt.pop %v1714
    %v1717 = vrsqrt.pop %v1715
    %v1718 = vmul.f32 %v1702, %v1716
    %v1719 = vmul.f32 %v1703, %v1717
    %v1721 = vlaneseq
    %v1722 = vshrl.u32 %v1721, 7
    %v1723 = vsub.s32 0, %v1722
    %v1724 = vrot.slane %v1691, %v1723
    %v1726 = vmul.f32 %v1718, %v1724
    %v1727 = vmul.f32 %v1719, %v1724
    %v1729 = vlaneseq
    %v1730 = vshrl.u32 %v1729, 7
    %v1731 = vsub.s32 0, %v1730
    %v1732 = vrot.slane %v1692, %v1731
    %v1734 = vadd.f32 %v1726, %v1732
    %v1735 = vadd.f32 %v1727, %v1732
    %v1736 = vld [vmem:[#allocation10] sm:$0xff]
    %v1737 = vld [vmem:[#allocation10 + $0x8] sm:$0xff]
    %v1738 = vld [vmem:[#allocation10 + $0x10] sm:$0xff]
    %v1739 = vld [vmem:[#allocation10 + $0x18] sm:$0xff]
    %v1740 = vld [vmem:[#allocation11] sm:$0x1]
    %v1742 = vlaneseq
    %v1743 = vshrl.u32 %v1742, 7
    %v1744 = vsub.s32 0, %v1743
    %v1745 = vrot.slane %v1740, %v1744
    %v1748 = vsel %vm155, %v1734, 0
    %v1751 = vsel %vm155, %v1735, 0
    %1753 = vmatprep.subr.mxu0 0.0
    %1754 = vmatpush1.msra.mxu0 0.0
    %1755 = vmatprep.subr.mxu0 0.0
    %1756 = vmatpush1.msra.mxu0 0.0
    %1757 = vmatprep.subr.mxu0 0.0
    %1758 = vmatpush1.msra.mxu0 0.0
    %1759 = vmatprep.subr.mxu0 0.0
    %1760 = vmatpush1.msra.mxu0 0.0
    %1761 = vmatprep.subr.mxu0 0.0
    %1762 = vmatpush1.msra.mxu0 0.0
    %1763 = vmatprep.subr.mxu0 0.0
    %1764 = vmatpush1.msra.mxu0 0.0
    %1765 = vmatprep.subr.mxu0 0.0
    %1766 = vmatpush1.msra.mxu0 0.0
    %1767 = vmatprep.subr.mxu0 0.0
    %1768 = vmatpush1.msra.mxu0 0.0
    %1769 = vmatprep.subr.mxu0 0.0
    %1770 = vmatpush1.msra.mxu0 0.0
    %1771 = vmatprep.subr.mxu0 0.0
    %1772 = vmatpush1.msra.mxu0 0.0
    %1773 = vmatprep.subr.mxu0 0.0
    %1774 = vmatpush1.msra.mxu0 0.0
    %1775 = vmatprep.subr.mxu0 0.0
    %1776 = vmatpush1.msra.mxu0 0.0
    %1777 = vmatprep.subr.mxu0 0.0
    %1778 = vmatpush1.msra.mxu0 %v1739
    %1779 = vmatprep.subr.mxu0 0.0
    %1780 = vmatpush1.msra.mxu0 %v1738
    %1781 = vmatprep.subr.mxu0 0.0
    %1782 = vmatpush1.msra.mxu0 %v1737
    %1783 = vmatprep.subr.mxu0 0.0
    %1784 = vmatpush1.msra.mxu0 %v1736
    %1785 = vmatprep.subr.mxu0 0.0
    %1786 = vmatpush2.msra.mxu0 0.0
    %1787 = vmatprep.subr.mxu0 0.0
    %1788 = vmatpush2.msra.mxu0 0.0
    %1789 = vmatprep.subr.mxu0 0.0
    %1790 = vmatpush2.msra.mxu0 0.0
    %1791 = vmatprep.subr.mxu0 0.0
    %1792 = vmatpush2.msra.mxu0 0.0
    %1793 = vmatprep.subr.mxu0 0.0
    %1794 = vmatpush2.msra.mxu0 0.0
    %1795 = vmatprep.subr.mxu0 0.0
    %1796 = vmatpush2.msra.mxu0 0.0
    %1797 = vmatprep.subr.mxu0 0.0
    %1798 = vmatpush2.msra.mxu0 0.0
    %1799 = vmatprep.subr.mxu0 0.0
    %1800 = vmatpush2.msra.mxu0 0.0
    %1801 = vmatprep.subr.mxu0 0.0
    %1802 = vmatpush2.msra.mxu0 0.0
    %1803 = vmatprep.subr.mxu0 0.0
    %1804 = vmatpush2.msra.mxu0 0.0
    %1805 = vmatprep.subr.mxu0 0.0
    %1806 = vmatpush2.msra.mxu0 0.0
    %1807 = vmatprep.subr.mxu0 0.0
    %1808 = vmatpush2.msra.mxu0 0.0
    %1809 = vmatprep.subr.mxu0 0.0
    %1810 = vmatpush2.msra.mxu0 0.0
    %1811 = vmatprep.subr.mxu0 0.0
    %1812 = vmatpush2.msra.mxu0 0.0
    %1813 = vmatprep.subr.mxu0 0.0
    %1814 = vmatpush2.msra.mxu0 0.0
    %1815 = vmatprep.subr.mxu0 0.0
    %1816 = vmatpush2.msra.mxu0 0.0
    %1817 = vmatprep.mubr.f32.mxu0 0.0
    %1818 = vmatmul.mubr.f32.gmra.mxu0 %v1748
    %v1819 = vpop.f32.mrf.mxu0
    %v1820 = vadd.f32 %v1745, %v1819
    %v1821 = vpop.f32.mrf.mxu0
    %1822 = vmatprep.mubr.f32.mxu0 0.0
    %1823 = vmatmul.mubr.f32.gmra.mxu0 %v1751
    %v1824 = vpop.f32.mrf.mxu0
    %v1825 = vadd.f32 %v1745, %v1824
    %v1826 = vpop.f32.mrf.mxu0
    %1827 = vdwg.mxu0
    %v1828 = vmax.f32 %v1820, 0.0
    %v1829 = vmax.f32 %v1825, 0.0
    %v1830 = vld [vmem:[%s8] sm:$0xff]
    %v1831 = vld [vmem:[%s8 + $0x8] sm:$0xff]
    %v1832 = vld [vmem:[%s8 + $0x10] sm:$0xff]
    %v1833 = vld [vmem:[%s8 + $0x18] sm:$0xff]
    %v1834 = vld [vmem:[%s8 + $0x20] sm:$0xff]
    %v1835 = vld [vmem:[%s8 + $0x28] sm:$0xff]
    %v1836 = vld [vmem:[%s8 + $0x30] sm:$0xff]
    %v1837 = vld [vmem:[%s8 + $0x38] sm:$0xff]
    %v1838 = vld [vmem:[#allocation13] sm:$0x1]
    %v1840 = vlaneseq
    %v1841 = vshrl.u32 %v1840, 7
    %v1842 = vsub.s32 0, %v1841
    %v1843 = vrot.slane %v1838, %v1842
    %vm1845 = vcmask 523264
    %v1847 = vsel %vm1845, %v1828, 0
    %v1850 = vsel %vm1845, %v1829, 0
    %1852 = vmatprep.subr.mxu0 0.0
    %1853 = vmatpush1.msra.mxu0 0.0
    %1854 = vmatprep.subr.mxu0 0.0
    %1855 = vmatpush1.msra.mxu0 0.0
    %1856 = vmatprep.subr.mxu0 0.0
    %1857 = vmatpush1.msra.mxu0 0.0
    %1858 = vmatprep.subr.mxu0 0.0
    %1859 = vmatpush1.msra.mxu0 0.0
    %1860 = vmatprep.subr.mxu0 0.0
    %1861 = vmatpush1.msra.mxu0 0.0
    %1862 = vmatprep.subr.mxu0 0.0
    %1863 = vmatpush1.msra.mxu0 0.0
    %1864 = vmatprep.subr.mxu0 0.0
    %1865 = vmatpush1.msra.mxu0 0.0
    %1866 = vmatprep.subr.mxu0 0.0
    %1867 = vmatpush1.msra.mxu0 0.0
    %1868 = vmatprep.subr.mxu0 0.0
    %1869 = vmatpush1.msra.mxu0 %v1837
    %1870 = vmatprep.subr.mxu0 0.0
    %1871 = vmatpush1.msra.mxu0 %v1836
    %1872 = vmatprep.subr.mxu0 0.0
    %1873 = vmatpush1.msra.mxu0 %v1835
    %1874 = vmatprep.subr.mxu0 0.0
    %1875 = vmatpush1.msra.mxu0 %v1834
    %1876 = vmatprep.subr.mxu0 0.0
    %1877 = vmatpush1.msra.mxu0 %v1833
    %1878 = vmatprep.subr.mxu0 0.0
    %1879 = vmatpush1.msra.mxu0 %v1832
    %1880 = vmatprep.subr.mxu0 0.0
    %1881 = vmatpush1.msra.mxu0 %v1831
    %1882 = vmatprep.subr.mxu0 0.0
    %1883 = vmatpush1.msra.mxu0 %v1830
    %1884 = vmatprep.subr.mxu0 0.0
    %1885 = vmatpush2.msra.mxu0 0.0
    %1886 = vmatprep.subr.mxu0 0.0
    %1887 = vmatpush2.msra.mxu0 0.0
    %1888 = vmatprep.subr.mxu0 0.0
    %1889 = vmatpush2.msra.mxu0 0.0
    %1890 = vmatprep.subr.mxu0 0.0
    %1891 = vmatpush2.msra.mxu0 0.0
    %1892 = vmatprep.subr.mxu0 0.0
    %1893 = vmatpush2.msra.mxu0 0.0
    %1894 = vmatprep.subr.mxu0 0.0
    %1895 = vmatpush2.msra.mxu0 0.0
    %1896 = vmatprep.subr.mxu0 0.0
    %1897 = vmatpush2.msra.mxu0 0.0
    %1898 = vmatprep.subr.mxu0 0.0
    %1899 = vmatpush2.msra.mxu0 0.0
    %1900 = vmatprep.subr.mxu0 0.0
    %1901 = vmatpush2.msra.mxu0 0.0
    %1902 = vmatprep.subr.mxu0 0.0
    %1903 = vmatpush2.msra.mxu0 0.0
    %1904 = vmatprep.subr.mxu0 0.0
    %1905 = vmatpush2.msra.mxu0 0.0
    %1906 = vmatprep.subr.mxu0 0.0
    %1907 = vmatpush2.msra.mxu0 0.0
    %1908 = vmatprep.subr.mxu0 0.0
    %1909 = vmatpush2.msra.mxu0 0.0
    %1910 = vmatprep.subr.mxu0 0.0
    %1911 = vmatpush2.msra.mxu0 0.0
    %1912 = vmatprep.subr.mxu0 0.0
    %1913 = vmatpush2.msra.mxu0 0.0
    %1914 = vmatprep.subr.mxu0 0.0
    %1915 = vmatpush2.msra.mxu0 0.0
    %1916 = vmatprep.mubr.f32.mxu0 0.0
    %1917 = vmatmul.mubr.f32.gmra.mxu0 %v1847
    %v1918 = vpop.f32.mrf.mxu0
    %v1919 = vadd.f32 %v1843, %v1918
    %v1920 = vpop.f32.mrf.mxu0
    %1921 = vmatprep.mubr.f32.mxu0 0.0
    %1922 = vmatmul.mubr.f32.gmra.mxu0 %v1850
    %v1923 = vpop.f32.mrf.mxu0
    %v1924 = vadd.f32 %v1843, %v1923
    %v1925 = vpop.f32.mrf.mxu0
    %1926 = vdwg.mxu0
    %v1927 = vadd.f32 %v1734, %v1919
    %v1928 = vadd.f32 %v1735, %v1924
    %v1929 = vld [vmem:[#allocation14] sm:$0x1]
    %v1930 = vld [vmem:[#allocation16] sm:$0x1]
    %v1931 = vsel %vm155, %v1927, 0.0
    %1932 = vadd.xlane.f32.xlu0 %v1931
    %v1933 = vpop.xlane.xlu0 %1932
    %v1934 = vsel %vm155, %v1928, 0.0
    %1935 = vadd.xlane.f32.xlu0 %v1934
    %v1936 = vpop.xlane.xlu0 %1935
    %v1937 = vmul.f32 %v1933, %v1699
    %v1938 = vmul.f32 %v1936, %v1699
    %v1939 = vsub.f32 %v1927, %v1937
    %v1940 = vsub.f32 %v1928, %v1938
    %v1941 = vmul.f32 %v1939, %v1939
    %v1942 = vmul.f32 %v1940, %v1940
    %v1943 = vsel %vm155, %v1941, 0.0
    %1944 = vadd.xlane.f32.xlu0 %v1943
    %v1945 = vpop.xlane.xlu0 %1944
    %v1946 = vsel %vm155, %v1942, 0.0
    %1947 = vadd.xlane.f32.xlu0 %v1946
    %v1948 = vpop.xlane.xlu0 %1947
    %v1949 = vmul.f32 %v1945, %v1699
    %v1950 = vmul.f32 %v1948, %v1699
    %v1951 = vadd.f32 %v1949, 1e-06
    %v1952 = vadd.f32 %v1950, 1e-06
    %v1953 = vrsqrt.pop %v1951
    %v1954 = vrsqrt.pop %v1952
    %v1955 = vmul.f32 %v1939, %v1953
    %v1956 = vmul.f32 %v1940, %v1954
    %v1958 = vlaneseq
    %v1959 = vshrl.u32 %v1958, 7
    %v1960 = vsub.s32 0, %v1959
    %v1961 = vrot.slane %v1929, %v1960
    %v1963 = vmul.f32 %v1955, %v1961
    %v1964 = vmul.f32 %v1956, %v1961
    %v1966 = vlaneseq
    %v1967 = vshrl.u32 %v1966, 7
    %v1968 = vsub.s32 0, %v1967
    %v1969 = vrot.slane %v1930, %v1968
    %v1971 = vadd.f32 %v1963, %v1969
    %v1972 = vadd.f32 %v1964, %v1969
    %1973 = vst.msk [vmem:[%s12] sm:$0xff] %vm155, %v1971
    %1974 = vst.msk [vmem:[%s12 + $0x8] sm:$0xff] %vm155, %v1972
    // Predicated region
    $region86: #{transformer_classifier_forward.3} parent=1 // pred_check
      _
    $region87: #{transformer_classifier_forward.3} parent=1 // pred_check_branch
      %1976 = sbr.rel (0) target = $region89
    $region88: #{transformer_classifier_forward.3} parent=1 // pred_region
      _
    $region89: #{transformer_classifier_forward.3} parent=1 // pred_fallthru
      _
    // Predicated region
    $region90: #{transformer_classifier_forward.3} parent=1 // pred_check
      _
    $region91: #{transformer_classifier_forward.3} parent=1 // pred_check_branch
      %1978 = sbr.rel (0) target = $region93
    $region92: #{transformer_classifier_forward.3} parent=1 // pred_region
      _
    $region93: #{transformer_classifier_forward.3} parent=1 // pred_fallthru
      _
    %1979 = vsyncpa [#allocation4], 1
    %1980 = vsyncpa [#allocation6], 1
    %1981 = vsyncpa [#allocation9], 1
    %1982 = vsyncpa [#allocation12], 1
    %1983 = vsyncpa [#allocation15], 1

</llo_original>
